<compile_context>
chip_gen: v7x
topology: tpu7x:2x2x1
jax: 0.10.0
libtpu: 0.0.40
codegen_flags: <defaults>
</compile_context>

<pallas_src>
import functools

import jax
import jax.numpy as jnp
from jax.experimental import pallas as pl
from jax.experimental.pallas import tpu as pltpu

_LANE = 128           # vreg lane width
_SUBLANE_BF16 = 16    # bf16 packs 16 rows per vreg
_TM_MAX = 128
_TK_MAX = 2048        # bf16 K slab: a 128 x 2048 bf16 x-tile is 512 KiB


def _round_up(v, m):
    return ((v + m - 1) // m) * m


def _k_tiling(dim):
    """Deterministic (padded K, K tile) shared by prepare_params and forward."""
    kp = _round_up(dim, _LANE)
    if kp <= _TK_MAX:
        return kp, kp               # whole K in one pass
    kp = _round_up(dim, _TK_MAX)
    return kp, _TK_MAX


def _n_tiling(num_labels, cap=4096):
    """Padded label width and label tile width.

    Picks the widest lane-dense slab that divides the padded width, stays
    under `cap` lanes, and leaves >= 2 label tiles when the axis is wide
    enough (so both v7x TensorCores have work even at tiny batch).
    """
    np_ = _round_up(num_labels, _LANE)
    want_split = np_ >= 1024
    tn = _LANE
    for cand in range(np_, 0, -_LANE):
        if np_ % cand == 0 and cand <= cap and not (want_split and cand == np_):
            tn = cand
            break
    return np_, tn


def prepare_params(weight, bias):
    """One-time (init-time) weight layout prep.

    weight: [num_labels, dim] (torch Linear layout), bias: [num_labels].
    Returns (W^T padded + bf16, bias padded f32 as [1, np_]). Doing this once
    removes ~2 full extra HBM copies of W from every forward call.
    """
    num_labels, dim = weight.shape
    kp, _ = _k_tiling(dim)
    np_, _ = _n_tiling(num_labels)
    w_t = jnp.pad(weight.astype(jnp.float32).T,
                  ((0, kp - dim), (0, np_ - num_labels))).astype(jnp.bfloat16)
    b_p = jnp.pad(bias.astype(jnp.float32).reshape(1, num_labels),
                  ((0, 0), (0, np_ - num_labels)))
    return w_t, b_p


def _linear_bias_kernel(x_ref, w_ref, b_ref, o_ref):
    # Whole K in one pass: out = x @ W^T + b  (bf16 operands, f32 accumulate).
    o_ref[...] = (jnp.dot(x_ref[...], w_ref[...],
                          preferred_element_type=jnp.float32)
                  + b_ref[...]).astype(o_ref.dtype)


def _linear_bias_kernel_ksplit(x_ref, w_ref, b_ref, o_ref):
    # K reduction kept: accumulate straight into the f32 output block (its
    # block index is constant over k); add bias on the last K step.
    k = pl.program_id(2)

    @pl.when(k == 0)
    def _():
        o_ref[...] = jnp.zeros_like(o_ref)

    o_ref[...] += jnp.dot(x_ref[...], w_ref[...],
                          preferred_element_type=jnp.float32)

    @pl.when(k == pl.num_programs(2) - 1)
    def _():
        o_ref[...] += b_ref[...]


@functools.partial(jax.jit, static_argnames=("num_labels",))
def linear_classifier_forward(x, w_t, bias_p, *, num_labels):
    """LinearClassifier.forward.

    x:      [B, ...]      (flattened to [B, dim] inside)
    w_t:    [kp, np_]     bf16, from prepare_params
    bias_p: [1, np_]      f32,  from prepare_params
    returns [B, num_labels] float32
    """
    b = x.shape[0]
    xf = x.reshape(b, -1)
    dim = xf.shape[1]

    kp, tk = _k_tiling(dim)
    np_, tn = _n_tiling(num_labels)
    assert w_t.shape == (kp, np_), (w_t.shape, (kp, np_))
    assert bias_p.shape == (1, np_), (bias_p.shape, (1, np_))

    # Row tile: multiple of 16 (bf16 sublane packing), clamped to batch.
    tm = min(_TM_MAX, _round_up(b, _SUBLANE_BF16))
    mp = _round_up(b, tm)

    # Zero-pad activations only (cheap, batch is tiny); cast to bf16 for MXU.
    xf = jnp.pad(xf.astype(jnp.bfloat16), ((0, mp - b), (0, kp - dim)))

    n_k = kp // tk
    if n_k == 1:
        grid = (mp // tm, np_ // tn)
        kernel = _linear_bias_kernel
        in_specs = [
            pl.BlockSpec((tm, tk), lambda i, j: (i, 0)),   # x tile
            pl.BlockSpec((tk, tn), lambda i, j: (0, j)),   # W^T tile
            pl.BlockSpec((1, tn), lambda i, j: (0, j)),    # bias tile
        ]
        out_spec = pl.BlockSpec((tm, tn), lambda i, j: (i, j))
        dims = ("parallel", "parallel")
    else:
        grid = (mp // tm, np_ // tn, n_k)                  # reduction axis last
        kernel = _linear_bias_kernel_ksplit
        in_specs = [
            pl.BlockSpec((tm, tk), lambda i, j, k: (i, k)),
            pl.BlockSpec((tk, tn), lambda i, j, k: (k, j)),
            pl.BlockSpec((1, tn), lambda i, j, k: (0, j)),
        ]
        out_spec = pl.BlockSpec((tm, tn), lambda i, j, k: (i, j))
        dims = ("parallel", "parallel", "arbitrary")

    out = pl.pallas_call(
        kernel,
        out_shape=jax.ShapeDtypeStruct((mp, np_), jnp.float32),
        grid_spec=pltpu.PrefetchScalarGridSpec(
            num_scalar_prefetch=0,
            grid=grid,
            in_specs=in_specs,
            out_specs=out_spec,
        ),
        compiler_params=pltpu.CompilerParams(
            dimension_semantics=dims,
            vmem_limit_bytes=48 << 20,
        ),
    )(xf, w_t, bias_p)

    return out[:b, :num_labels]


if __name__ == "__main__":
    # Small deterministic example: frozen backbone features [B, C, H, W].
    B, C, H, W = 2, 4, 16, 16
    DIM = C * H * W            # 1024 -> single K pass
    NUM_LABELS = 1000          # torch default; lane-padded to 1024, tn=512

    key = jax.random.PRNGKey(0)
    kx, kw = jax.random.split(key)
    x = jax.random.normal(kx, (B, C, H, W), jnp.float32)
    # Matches torch init: weight ~ N(0, 0.01), bias = 0.
    weight = 0.01 * jax.random.normal(kw, (NUM_LABELS, DIM), jnp.float32)
    bias = jnp.zeros((NUM_LABELS,), jnp.float32)

    # One-time weight layout prep (hoisted out of the per-call forward).
    w_t, bias_p = prepare_params(weight, bias)

    out = linear_classifier_forward(x, w_t, bias_p, num_labels=NUM_LABELS)
    out = jax.block_until_ready(out)

    # Pure-JAX f32 reference for correctness (kernel uses bf16 operands).
    ref = x.reshape(B, -1) @ weight.T + bias

    assert out.shape == (B, NUM_LABELS)
    assert bool(jnp.all(jnp.isfinite(out)))
    assert jnp.allclose(out, ref, atol=2e-2, rtol=2e-2)
    print("KERNEL_OK")
</pallas_src>

<mosaic_0001>
module attributes {stable_mosaic.version = 11 : i64} {
  func.func @_linear_bias_kernel(%arg0: i32, %arg1: i32, %arg2: memref<16x1024xbf16, #tpu.memory_space<vmem>>, %arg3: memref<1024x512xbf16, #tpu.memory_space<vmem>>, %arg4: memref<1x512xf32, #tpu.memory_space<vmem>>, %arg5: memref<16x512xf32, #tpu.memory_space<vmem>>) attributes {dimension_semantics = [#tpu.dimension_semantics<parallel>, #tpu.dimension_semantics<parallel>], iteration_bounds = array<i64: 1, 2>, scalar_prefetch = 0 : i64, scratch_operands = 0 : i64, tpu.core_type = #tpu.core_type<tc>, window_params = [{transform_indices = @transform_0, window_bounds = array<i64: 16, 1024>}, {transform_indices = @transform_1, window_bounds = array<i64: 1024, 512>}, {transform_indices = @transform_2, window_bounds = array<i64: 1, 512>}, {transform_indices = @transform_3, window_bounds = array<i64: 16, 512>}]} {
    %c0 = arith.constant 0 : index
    %c0_0 = arith.constant 0 : index
    %0 = vector.load %arg2[%c0, %c0_0] : memref<16x1024xbf16, #tpu.memory_space<vmem>>, vector<16x1024xbf16>
    %c0_1 = arith.constant 0 : index
    %c0_2 = arith.constant 0 : index
    %1 = vector.load %arg3[%c0_1, %c0_2] : memref<1024x512xbf16, #tpu.memory_space<vmem>>, vector<1024x512xbf16>
    %cst = arith.constant dense<0.000000e+00> : vector<16x512xf32>
    %2 = tpu.matmul %0, %1, %cst {dimension_numbers = #tpu.dot_dimension_numbers<[1], [0], [0], [1], [0, 0, 1, 1], [], []>} : vector<16x1024xbf16>, vector<1024x512xbf16>, vector<16x512xf32> -> vector<16x512xf32>
    %c0_3 = arith.constant 0 : index
    %c0_4 = arith.constant 0 : index
    %3 = vector.load %arg4[%c0_3, %c0_4] : memref<1x512xf32, #tpu.memory_space<vmem>>, vector<1x512xf32>
    %4 = vector.broadcast %3 : vector<1x512xf32> to vector<16x512xf32>
    %5 = arith.addf %2, %4 : vector<16x512xf32>
    %c0_5 = arith.constant 0 : index
    %c0_6 = arith.constant 0 : index
    %6 = vector.load %arg5[%c0_5, %c0_6] : memref<16x512xf32, #tpu.memory_space<vmem>>, vector<16x512xf32>
    tpu.vector_store %arg5[%c0_5, %c0_6], %5 {strides = array<i32>} : memref<16x512xf32, #tpu.memory_space<vmem>>, vector<16x512xf32>,
    return
  }
  func.func @transform_0(%arg0: i32, %arg1: i32) -> (i32, i32) {
    %c0_i32 = arith.constant 0 : i32
    %c0_i32_0 = arith.constant 0 : i32
    return %arg0, %c0_i32 : i32, i32
  }
  func.func @transform_1(%arg0: i32, %arg1: i32) -> (i32, i32) {
    %c0_i32 = arith.constant 0 : i32
    %c0_i32_0 = arith.constant 0 : i32
    return %c0_i32, %arg1 : i32, i32
  }
  func.func @transform_2(%arg0: i32, %arg1: i32) -> (i32, i32) {
    %c0_i32 = arith.constant 0 : i32
    %c0_i32_0 = arith.constant 0 : i32
    return %c0_i32, %arg1 : i32, i32
  }
  func.func @transform_3(%arg0: i32, %arg1: i32) -> (i32, i32) {
    %c0_i32 = arith.constant 0 : i32
    return %arg0, %arg1 : i32, i32
  }
}

</mosaic_0001>

<llo_original>
// kernel: linear_classifier_forward.1
$region0: #{linear_classifier_forward.1}
  #allocation0 [shape = 'u32[]', space=smem, size = 0x4, offset = 0x4, fixed_abs, tag = 'smem constant byte address 0x4 - core index']
  #allocation1 [shape = 'u32[144,128]{1,0:T(1,128)}', space=vmem, size = 0x12000, scoped, tag = 'internal scratch']
  %s0 = inlined_call_operand.vmem [shape: bf16[16,1024], index: 0, kind: input, shape index: {}]
  %s1 = inlined_call_operand.hbm [shape: bf16[1024,1024], index: 1, kind: input, shape index: {}]
  %s2 = inlined_call_operand.hbm [shape: f32[1,1024], index: 2, kind: input, shape index: {}]
  %s3 = inlined_call_operand.vmem [shape: f32[16,1024], index: 3, kind: output, shape index: {}]
  %s4 = sld [smem:[#allocation0]]
  $region72: #{linear_classifier_forward.1} parent=0
    _
  %s6 = ssub.s32 1, %s4
  %s7 = scalar_select 0, %s6, %s4
  $region1: #{linear_classifier_forward.1} parent=0
    #allocation2 [shape = 'u8[2097152]{0}', space=vmem, size = 0x200000, scoped, tag = 'input window, operand 1']
    #allocation3 [shape = 's32[2]{0}', space=sflag, size = 0x8, scoped, tag = 'scoped memory for linear_classifier_forward.1']
    #allocation4 [shape = 'u8[4096]{0}', space=vmem, size = 0x1000, scoped, tag = 'input window, operand 2']
    #allocation5 [shape = 's32[2]{0}', space=sflag, size = 0x8, scoped, tag = 'scoped memory for linear_classifier_forward.1']
    #allocation6 [shape = 'u8[65536]{0}', space=vmem, size = 0x10000, scoped, tag = 'output window, operand 0']
    %8 = vsyncpa [#allocation3], 0
    %s9 = scalar_lea.sflag [#allocation3], 1
    %10 = vsyncpa %s9, 0
    %11 = vsyncpa [#allocation5], 0
    %s12 = scalar_lea.sflag [#allocation5], 1
    %13 = vsyncpa %s12, 0
    loop: start=0, step=1, limit=4
    $region2: #{linear_classifier_forward.1} parent=1 // loop_pre_header
      _
    $region3: #{linear_classifier_forward.1} parent=1 // loop_header
      %s15 = sphi 0, %s19
      %p16 = scmp.ge.s32.totalorder %s15, 4
      %s22 = sphi 0, %s34
      %s23 = sphi 0, %s30
      %s24 = sphi 0, %s22
      %s25 = sphi 0, %s23
      %s26 = sphi 0, %s24
      %s27 = sphi 0, %s25
      %s37 = sphi 0, %s39
      %s40 = sphi 0, %s37
      %s41 = sphi 0, %s40
      %s57 = sphi 0, %s41
      %s63 = sphi 0, %s65
      %s66 = sphi 0, %s63
      %s67 = sphi 0, %s66
      %s83 = sphi 0, %s67
      %s89 = sphi 0, %s91
      %s92 = sphi 0, %s89
      %s93 = sphi 0, %s92
      %s109 = sphi 0, %s93
      %s117 = sphi 0, %s119
      %s120 = sphi 0, %s117
      %s121 = sphi 0, %s120
      %s137 = sphi 0, %s121
    $region4: #{linear_classifier_forward.1} parent=1 // loop_header_branch
      %18 = sbr.rel (%p16) target = $region8
    $region5: #{linear_classifier_forward.1} parent=1 // loop_body
      %s20 = ssub.s32 %s15, 1
      %s21 = ssub.s32 %s15, 2
      %s28 = sadd.s32 1, %s23
      %p29 = scmp.ge.s32.totalorder %s28, 2
      %s30 = scalar_select %p29, 0, %s28
      %s31 = sadd.s32 1, %s22
      %s32 = scalar_select %p29, %s31, %s22
      %p33 = scmp.ge.s32.totalorder %s32, 1
      %s34 = scalar_select %p33, 0, %s32
      %s35 = ssub.s32 %s22, %s34
      %p36 = scmp.eq.s32.totalorder %s35, 0
      %s38 = sadd.s32 %s37, 1
      %s39 = scalar_select %p36, %s37, %s38
      %p42 = pneg %p36
      %p43 = scmp.eq.s32.totalorder %s15, 1
      %p44 = por %p42, %p43
      %p45 = scmp.ne.s32.totalorder %s37, %s40
      %p46 = scmp.eq.s32.totalorder %s15, 0
      %p47 = por %p45, %p46
      %p48 = scmp.ne.s32.totalorder %s37, %s40
      %p49 = scmp.eq.s32.totalorder %s20, 1
      %p50 = por %p48, %p49
      %p51 = scmp.ne.s32.totalorder %s40, %s41
      %p52 = scmp.eq.s32.totalorder %s20, 0
      %p53 = por %p51, %p52
      %p54 = scmp.ne.s32.totalorder %s40, %s41
      %p55 = scmp.eq.s32.totalorder %s21, 1
      %p56 = por %p54, %p55
      %p58 = scmp.ne.s32.totalorder %s41, %s57
      %p59 = scmp.eq.s32.totalorder %s21, 0
      %p60 = por %p58, %p59
      %s61 = ssub.s32 %s23, %s30
      %p62 = scmp.eq.s32.totalorder %s61, 0
      %s64 = sadd.s32 %s63, 1
      %s65 = scalar_select %p62, %s63, %s64
      %p68 = pneg %p62
      %p69 = scmp.eq.s32.totalorder %s15, 1
      %p70 = por %p68, %p69
      %p71 = scmp.ne.s32.totalorder %s63, %s66
      %p72 = scmp.eq.s32.totalorder %s15, 0
      %p73 = por %p71, %p72
      %p74 = scmp.ne.s32.totalorder %s63, %s66
      %p75 = scmp.eq.s32.totalorder %s20, 1
      %p76 = por %p74, %p75
      %p77 = scmp.ne.s32.totalorder %s66, %s67
      %p78 = scmp.eq.s32.totalorder %s20, 0
      %p79 = por %p77, %p78
      %p80 = scmp.ne.s32.totalorder %s66, %s67
      %p81 = scmp.eq.s32.totalorder %s21, 1
      %p82 = por %p80, %p81
      %p84 = scmp.ne.s32.totalorder %s67, %s83
      %p85 = scmp.eq.s32.totalorder %s21, 0
      %p86 = por %p84, %p85
      %s87 = ssub.s32 %s23, %s30
      %p88 = scmp.eq.s32.totalorder %s87, 0
      %s90 = sadd.s32 %s89, 1
      %s91 = scalar_select %p88, %s89, %s90
      %p94 = pneg %p88
      %p95 = scmp.eq.s32.totalorder %s15, 1
      %p96 = por %p94, %p95
      %p97 = scmp.ne.s32.totalorder %s89, %s92
      %p98 = scmp.eq.s32.totalorder %s15, 0
      %p99 = por %p97, %p98
      %p100 = scmp.ne.s32.totalorder %s89, %s92
      %p101 = scmp.eq.s32.totalorder %s20, 1
      %p102 = por %p100, %p101
      %p103 = scmp.ne.s32.totalorder %s92, %s93
      %p104 = scmp.eq.s32.totalorder %s20, 0
      %p105 = por %p103, %p104
      %p106 = scmp.ne.s32.totalorder %s92, %s93
      %p107 = scmp.eq.s32.totalorder %s21, 1
      %p108 = por %p106, %p107
      %p110 = scmp.ne.s32.totalorder %s93, %s109
      %p111 = scmp.eq.s32.totalorder %s21, 0
      %p112 = por %p110, %p111
      %s113 = ssub.s32 %s22, %s34
      %s114 = ssub.s32 %s23, %s30
      %s115 = sor.u32 %s113, %s114
      %p116 = scmp.eq.s32.totalorder %s115, 0
      %s118 = sadd.s32 %s117, 1
      %s119 = scalar_select %p116, %s117, %s118
      %p122 = pneg %p116
      %p123 = scmp.eq.s32.totalorder %s15, 1
      %p124 = por %p122, %p123
      %p125 = scmp.ne.s32.totalorder %s117, %s120
      %p126 = scmp.eq.s32.totalorder %s15, 0
      %p127 = por %p125, %p126
      %p128 = scmp.ne.s32.totalorder %s117, %s120
      %p129 = scmp.eq.s32.totalorder %s20, 1
      %p130 = por %p128, %p129
      %p131 = scmp.ne.s32.totalorder %s120, %s121
      %p132 = scmp.eq.s32.totalorder %s20, 0
      %p133 = por %p131, %p132
      %p134 = scmp.ne.s32.totalorder %s120, %s121
      %p135 = scmp.eq.s32.totalorder %s21, 1
      %p136 = por %p134, %p135
      %p138 = scmp.ne.s32.totalorder %s121, %s137
      %p139 = scmp.eq.s32.totalorder %s21, 0
      %p140 = por %p138, %p139
      %p141 = scmp.le.s32.totalorder 1, %s15
      %p142 = scmp.lt.s32.totalorder %s15, 3
      %p143 = pnand %p141, %p142
      %p144 = pneg %p143
      // Predicated region
      $region9: #{linear_classifier_forward.1} parent=5 // pred_check
        _
      $region10: #{linear_classifier_forward.1} parent=5 // pred_check_branch
        %146 = sbr.rel (%p143) target = $region12
      $region11: #{linear_classifier_forward.1} parent=5 // pred_region
        %s147 = ssub.s32 %s15, 1
        // Predicated region
        $region13: #{linear_classifier_forward.1} parent=11 // pred_check
          %p148 = pneg %p53
        $region14: #{linear_classifier_forward.1} parent=11 // pred_check_branch
          %150 = sbr.rel (%p148) target = $region16
        $region15: #{linear_classifier_forward.1} parent=11 // pred_region
          %s151 = smul.u32 2, %s24
          %p152 = scmp.lt.s32.totalorder %s151, 1
          %s153 = scalar_select %p152, %s151, 1
          %s154 = smul.addr %s153, 8
          %s155 = smul.addr %s154, 4
          %s156 = scalar_lea.vmem %s0, %s155
          %s157 = smul.u32 2, %s24
        $region16: #{linear_classifier_forward.1} parent=11 // pred_fallthru
          _
      $region12: #{linear_classifier_forward.1} parent=5 // pred_fallthru
        _
      %p158 = scmp.lt.s32.totalorder %s15, 2
      // Predicated region
      $region17: #{linear_classifier_forward.1} parent=5 // pred_check
        %p159 = pneg %p158
      $region18: #{linear_classifier_forward.1} parent=5 // pred_check_branch
        %161 = sbr.rel (%p159) target = $region20
      $region19: #{linear_classifier_forward.1} parent=5 // pred_region
        // Predicated region
        $region21: #{linear_classifier_forward.1} parent=19 // pred_check
          %p162 = pneg %p73
        $region22: #{linear_classifier_forward.1} parent=19 // pred_check_branch
          %164 = sbr.rel (%p162) target = $region24
        $region23: #{linear_classifier_forward.1} parent=19 // pred_region
          %s165 = sand.u32 %s63, 1
          %s166 = scalar_lea.sflag [#allocation3], %s165
          %s167 = sand.u32 %s63, 1
          %s168 = smul.addr %s167, 2048
          %s169 = scalar_lea.vmem [#allocation2], %s168
          %s170 = smul.u32 4, %s23
          %s172 = ssub.s32 32768, 32768
          %173 = vsyncadd %s166, %s172
          %s174 = smul.addr %s170, 64
          %s175 = scalar_lea.hbm %s1, %s174
          %s176 = sshll.u32 %s169, 4
          %s177 = int_to_ptr.vmem [resolvable:$true] %s176
          %182 = dma.hbm_to_vmem [thread:$0]  %s175, 32768, %s177, %s166, 512, 256, 16
        $region24: #{linear_classifier_forward.1} parent=19 // pred_fallthru
          _
        // Predicated region
        $region25: #{linear_classifier_forward.1} parent=19 // pred_check
          %p183 = pneg %p99
        $region26: #{linear_classifier_forward.1} parent=19 // pred_check_branch
          %185 = sbr.rel (%p183) target = $region28
        $region27: #{linear_classifier_forward.1} parent=19 // pred_region
          %s186 = sand.u32 %s89, 1
          %s187 = scalar_lea.sflag [#allocation5], %s186
          %s188 = sand.u32 %s89, 1
          %s189 = smul.addr %s188, 4
          %s190 = scalar_lea.vmem [#allocation4], %s189
          %s191 = smul.u32 4, %s23
          %s193 = ssub.s32 64, 64
          %194 = vsyncadd %s187, %s193
          %s195 = smul.addr %s191, 16
          %s196 = scalar_lea.hbm %s2, %s195
          %s198 = sshll.u32 %s190, 4
          %s199 = int_to_ptr.vmem [resolvable:$true] %s198
          %201 = dma.hbm_to_vmem [thread:$0]  %s196, 64, %s199, %s187
        $region28: #{linear_classifier_forward.1} parent=19 // pred_fallthru
          _
      $region20: #{linear_classifier_forward.1} parent=5 // pred_fallthru
        _
      %p202 = scmp.le.s32.totalorder 1, %s15
      %p203 = scmp.lt.s32.totalorder %s15, 3
      %p204 = pnand %p202, %p203
      %p205 = pneg %p204
      // Predicated region
      $region29: #{linear_classifier_forward.1} parent=5 // pred_check
        _
      $region30: #{linear_classifier_forward.1} parent=5 // pred_check_branch
        %207 = sbr.rel (%p204) target = $region32
      $region31: #{linear_classifier_forward.1} parent=5 // pred_region
        %s208 = ssub.s32 %s15, 1
        %s209 = sand.u32 %s66, 1
        %s210 = scalar_lea.sflag [#allocation3], %s209
        %s211 = sand.u32 %s66, 1
        %s212 = smul.addr %s211, 2048
        %s213 = scalar_lea.vmem [#allocation2], %s212
        // Predicated region
        $region33: #{linear_classifier_forward.1} parent=31 // pred_check
          %p214 = pneg %p79
        $region34: #{linear_classifier_forward.1} parent=31 // pred_check_branch
          %216 = sbr.rel (%p214) target = $region36
        $region35: #{linear_classifier_forward.1} parent=31 // pred_region
          %217 = dma.done %s210, 32768
        $region36: #{linear_classifier_forward.1} parent=31 // pred_fallthru
          _
        %s218 = sand.u32 %s92, 1
        %s219 = scalar_lea.sflag [#allocation5], %s218
        %s220 = sand.u32 %s92, 1
        %s221 = smul.addr %s220, 4
        %s222 = scalar_lea.vmem [#allocation4], %s221
        // Predicated region
        $region37: #{linear_classifier_forward.1} parent=31 // pred_check
          %p223 = pneg %p105
        $region38: #{linear_classifier_forward.1} parent=31 // pred_check_branch
          %225 = sbr.rel (%p223) target = $region40
        $region39: #{linear_classifier_forward.1} parent=31 // pred_region
          %226 = dma.done %s219, 64
        $region40: #{linear_classifier_forward.1} parent=31 // pred_fallthru
          _
        %s227 = smul.u32 2, %s24
        %p228 = scmp.lt.s32.totalorder %s227, 1
        %s229 = scalar_select %p228, %s227, 1
        %s230 = smul.addr %s229, 8
        %s231 = smul.addr %s230, 4
        %s232 = scalar_lea.vmem %s0, %s231
        %p233 = pneg %p53
        %p234 = pneg %p50
        %s235 = sand.u32 %s66, 1
        %s236 = scalar_lea.sflag [#allocation3], %s235
        %s237 = sand.u32 %s66, 1
        %s238 = smul.addr %s237, 2048
        %s239 = scalar_lea.vmem [#allocation2], %s238
        %p240 = pneg %p79
        %p241 = pneg %p76
        %s242 = sand.u32 %s92, 1
        %s243 = scalar_lea.sflag [#allocation5], %s242
        %s244 = sand.u32 %s92, 1
        %s245 = smul.addr %s244, 4
        %s246 = scalar_lea.vmem [#allocation4], %s245
        %p247 = pneg %p105
        %p248 = pneg %p102
        %p249 = pneg %p133
        %p250 = pneg %p130
        %s251 = sand.u32 %s120, 1
        %s252 = sand.u32 %s120, 1
        %s253 = smul.addr %s252, 64
        %s254 = scalar_lea.vmem [#allocation6], %s253
        %s255 = smul.u32 2, %s24
        %p256 = scmp.lt.s32.totalorder %s255, 1
        %s257 = scalar_select %p256, %s255, 1
        %s258 = smul.addr %s257, 8
        %s259 = smul.addr %s258, 4
        %s260 = scalar_lea.vmem %s0, %s259
        %s261 = smul.u32 2, %s24
        %s262 = smul.u32 4, %s25
        %s263 = smul.u32 4, %s25
        %s264 = smul.u32 2, %s24
        %s265 = smul.u32 4, %s25
        %v266 = vld [vmem:[%s260] sm:$0xff]
        %v267 = vld [vmem:[%s260 + $0x8] sm:$0xff]
        %v268 = vld [vmem:[%s260 + $0x10] sm:$0xff]
        %v269 = vld [vmem:[%s260 + $0x18] sm:$0xff]
        %v270 = vld [vmem:[%s260 + $0x20] sm:$0xff]
        %v271 = vld [vmem:[%s260 + $0x28] sm:$0xff]
        %v272 = vld [vmem:[%s260 + $0x30] sm:$0xff]
        %v273 = vld [vmem:[%s260 + $0x38] sm:$0xff]
        %v274 = vld [vmem:[%s213] sm:$0xff]
        %v275 = vld [vmem:[%s213 + $0x8] sm:$0xff]
        %v276 = vld [vmem:[%s213 + $0x10] sm:$0xff]
        %v277 = vld [vmem:[%s213 + $0x18] sm:$0xff]
        %v278 = vld [vmem:[%s213 + $0x20] sm:$0xff]
        %v279 = vld [vmem:[%s213 + $0x28] sm:$0xff]
        %v280 = vld [vmem:[%s213 + $0x30] sm:$0xff]
        %v281 = vld [vmem:[%s213 + $0x38] sm:$0xff]
        %v282 = vld [vmem:[%s213 + $0x40] sm:$0xff]
        %v283 = vld [vmem:[%s213 + $0x48] sm:$0xff]
        %v284 = vld [vmem:[%s213 + $0x50] sm:$0xff]
        %v285 = vld [vmem:[%s213 + $0x58] sm:$0xff]
        %v286 = vld [vmem:[%s213 + $0x60] sm:$0xff]
        %v287 = vld [vmem:[%s213 + $0x68] sm:$0xff]
        %v288 = vld [vmem:[%s213 + $0x70] sm:$0xff]
        %v289 = vld [vmem:[%s213 + $0x78] sm:$0xff]
        %v290 = vld [vmem:[%s213 + $0x80] sm:$0xff]
        %v291 = vld [vmem:[%s213 + $0x88] sm:$0xff]
        %v292 = vld [vmem:[%s213 + $0x90] sm:$0xff]
        %v293 = vld [vmem:[%s213 + $0x98] sm:$0xff]
        %v294 = vld [vmem:[%s213 + $0xa0] sm:$0xff]
        %v295 = vld [vmem:[%s213 + $0xa8] sm:$0xff]
        %v296 = vld [vmem:[%s213 + $0xb0] sm:$0xff]
        %v297 = vld [vmem:[%s213 + $0xb8] sm:$0xff]
        %v298 = vld [vmem:[%s213 + $0xc0] sm:$0xff]
        %v299 = vld [vmem:[%s213 + $0xc8] sm:$0xff]
        %v300 = vld [vmem:[%s213 + $0xd0] sm:$0xff]
        %v301 = vld [vmem:[%s213 + $0xd8] sm:$0xff]
        %v302 = vld [vmem:[%s213 + $0xe0] sm:$0xff]
        %v303 = vld [vmem:[%s213 + $0xe8] sm:$0xff]
        %v304 = vld [vmem:[%s213 + $0xf0] sm:$0xff]
        %v305 = vld [vmem:[%s213 + $0xf8] sm:$0xff]
        %v306 = vld [vmem:[%s213 + $0x100] sm:$0xff]
        %v307 = vld [vmem:[%s213 + $0x108] sm:$0xff]
        %v308 = vld [vmem:[%s213 + $0x110] sm:$0xff]
        %v309 = vld [vmem:[%s213 + $0x118] sm:$0xff]
        %v310 = vld [vmem:[%s213 + $0x120] sm:$0xff]
        %v311 = vld [vmem:[%s213 + $0x128] sm:$0xff]
        %v312 = vld [vmem:[%s213 + $0x130] sm:$0xff]
        %v313 = vld [vmem:[%s213 + $0x138] sm:$0xff]
        %v314 = vld [vmem:[%s213 + $0x140] sm:$0xff]
        %v315 = vld [vmem:[%s213 + $0x148] sm:$0xff]
        %v316 = vld [vmem:[%s213 + $0x150] sm:$0xff]
        %v317 = vld [vmem:[%s213 + $0x158] sm:$0xff]
        %v318 = vld [vmem:[%s213 + $0x160] sm:$0xff]
        %v319 = vld [vmem:[%s213 + $0x168] sm:$0xff]
        %v320 = vld [vmem:[%s213 + $0x170] sm:$0xff]
        %v321 = vld [vmem:[%s213 + $0x178] sm:$0xff]
        %v322 = vld [vmem:[%s213 + $0x180] sm:$0xff]
        %v323 = vld [vmem:[%s213 + $0x188] sm:$0xff]
        %v324 = vld [vmem:[%s213 + $0x190] sm:$0xff]
        %v325 = vld [vmem:[%s213 + $0x198] sm:$0xff]
        %v326 = vld [vmem:[%s213 + $0x1a0] sm:$0xff]
        %v327 = vld [vmem:[%s213 + $0x1a8] sm:$0xff]
        %v328 = vld [vmem:[%s213 + $0x1b0] sm:$0xff]
        %v329 = vld [vmem:[%s213 + $0x1b8] sm:$0xff]
        %v330 = vld [vmem:[%s213 + $0x1c0] sm:$0xff]
        %v331 = vld [vmem:[%s213 + $0x1c8] sm:$0xff]
        %v332 = vld [vmem:[%s213 + $0x1d0] sm:$0xff]
        %v333 = vld [vmem:[%s213 + $0x1d8] sm:$0xff]
        %v334 = vld [vmem:[%s213 + $0x1e0] sm:$0xff]
        %v335 = vld [vmem:[%s213 + $0x1e8] sm:$0xff]
        %v336 = vld [vmem:[%s213 + $0x1f0] sm:$0xff]
        %v337 = vld [vmem:[%s213 + $0x1f8] sm:$0xff]
        %v338 = vld [vmem:[%s213 + $0x200] sm:$0xff]
        %v339 = vld [vmem:[%s213 + $0x208] sm:$0xff]
        %v340 = vld [vmem:[%s213 + $0x210] sm:$0xff]
        %v341 = vld [vmem:[%s213 + $0x218] sm:$0xff]
        %v342 = vld [vmem:[%s213 + $0x220] sm:$0xff]
        %v343 = vld [vmem:[%s213 + $0x228] sm:$0xff]
        %v344 = vld [vmem:[%s213 + $0x230] sm:$0xff]
        %v345 = vld [vmem:[%s213 + $0x238] sm:$0xff]
        %v346 = vld [vmem:[%s213 + $0x240] sm:$0xff]
        %v347 = vld [vmem:[%s213 + $0x248] sm:$0xff]
        %v348 = vld [vmem:[%s213 + $0x250] sm:$0xff]
        %v349 = vld [vmem:[%s213 + $0x258] sm:$0xff]
        %v350 = vld [vmem:[%s213 + $0x260] sm:$0xff]
        %v351 = vld [vmem:[%s213 + $0x268] sm:$0xff]
        %v352 = vld [vmem:[%s213 + $0x270] sm:$0xff]
        %v353 = vld [vmem:[%s213 + $0x278] sm:$0xff]
        %v354 = vld [vmem:[%s213 + $0x280] sm:$0xff]
        %v355 = vld [vmem:[%s213 + $0x288] sm:$0xff]
        %v356 = vld [vmem:[%s213 + $0x290] sm:$0xff]
        %v357 = vld [vmem:[%s213 + $0x298] sm:$0xff]
        %v358 = vld [vmem:[%s213 + $0x2a0] sm:$0xff]
        %v359 = vld [vmem:[%s213 + $0x2a8] sm:$0xff]
        %v360 = vld [vmem:[%s213 + $0x2b0] sm:$0xff]
        %v361 = vld [vmem:[%s213 + $0x2b8] sm:$0xff]
        %v362 = vld [vmem:[%s213 + $0x2c0] sm:$0xff]
        %v363 = vld [vmem:[%s213 + $0x2c8] sm:$0xff]
        %v364 = vld [vmem:[%s213 + $0x2d0] sm:$0xff]
        %v365 = vld [vmem:[%s213 + $0x2d8] sm:$0xff]
        %v366 = vld [vmem:[%s213 + $0x2e0] sm:$0xff]
        %v367 = vld [vmem:[%s213 + $0x2e8] sm:$0xff]
        %v368 = vld [vmem:[%s213 + $0x2f0] sm:$0xff]
        %v369 = vld [vmem:[%s213 + $0x2f8] sm:$0xff]
        %v370 = vld [vmem:[%s213 + $0x300] sm:$0xff]
        %v371 = vld [vmem:[%s213 + $0x308] sm:$0xff]
        %v372 = vld [vmem:[%s213 + $0x310] sm:$0xff]
        %v373 = vld [vmem:[%s213 + $0x318] sm:$0xff]
        %v374 = vld [vmem:[%s213 + $0x320] sm:$0xff]
        %v375 = vld [vmem:[%s213 + $0x328] sm:$0xff]
        %v376 = vld [vmem:[%s213 + $0x330] sm:$0xff]
        %v377 = vld [vmem:[%s213 + $0x338] sm:$0xff]
        %v378 = vld [vmem:[%s213 + $0x340] sm:$0xff]
        %v379 = vld [vmem:[%s213 + $0x348] sm:$0xff]
        %v380 = vld [vmem:[%s213 + $0x350] sm:$0xff]
        %v381 = vld [vmem:[%s213 + $0x358] sm:$0xff]
        %v382 = vld [vmem:[%s213 + $0x360] sm:$0xff]
        %v383 = vld [vmem:[%s213 + $0x368] sm:$0xff]
        %v384 = vld [vmem:[%s213 + $0x370] sm:$0xff]
        %v385 = vld [vmem:[%s213 + $0x378] sm:$0xff]
        %v386 = vld [vmem:[%s213 + $0x380] sm:$0xff]
        %v387 = vld [vmem:[%s213 + $0x388] sm:$0xff]
        %v388 = vld [vmem:[%s213 + $0x390] sm:$0xff]
        %v389 = vld [vmem:[%s213 + $0x398] sm:$0xff]
        %v390 = vld [vmem:[%s213 + $0x3a0] sm:$0xff]
        %v391 = vld [vmem:[%s213 + $0x3a8] sm:$0xff]
        %v392 = vld [vmem:[%s213 + $0x3b0] sm:$0xff]
        %v393 = vld [vmem:[%s213 + $0x3b8] sm:$0xff]
        %v394 = vld [vmem:[%s213 + $0x3c0] sm:$0xff]
        %v395 = vld [vmem:[%s213 + $0x3c8] sm:$0xff]
        %v396 = vld [vmem:[%s213 + $0x3d0] sm:$0xff]
        %v397 = vld [vmem:[%s213 + $0x3d8] sm:$0xff]
        %v398 = vld [vmem:[%s213 + $0x3e0] sm:$0xff]
        %v399 = vld [vmem:[%s213 + $0x3e8] sm:$0xff]
        %v400 = vld [vmem:[%s213 + $0x3f0] sm:$0xff]
        %v401 = vld [vmem:[%s213 + $0x3f8] sm:$0xff]
        %v402 = vld [vmem:[%s213 + $0x400] sm:$0xff]
        %v403 = vld [vmem:[%s213 + $0x408] sm:$0xff]
        %v404 = vld [vmem:[%s213 + $0x410] sm:$0xff]
        %v405 = vld [vmem:[%s213 + $0x418] sm:$0xff]
        %v406 = vld [vmem:[%s213 + $0x420] sm:$0xff]
        %v407 = vld [vmem:[%s213 + $0x428] sm:$0xff]
        %v408 = vld [vmem:[%s213 + $0x430] sm:$0xff]
        %v409 = vld [vmem:[%s213 + $0x438] sm:$0xff]
        %v410 = vld [vmem:[%s213 + $0x440] sm:$0xff]
        %v411 = vld [vmem:[%s213 + $0x448] sm:$0xff]
        %v412 = vld [vmem:[%s213 + $0x450] sm:$0xff]
        %v413 = vld [vmem:[%s213 + $0x458] sm:$0xff]
        %v414 = vld [vmem:[%s213 + $0x460] sm:$0xff]
        %v415 = vld [vmem:[%s213 + $0x468] sm:$0xff]
        %v416 = vld [vmem:[%s213 + $0x470] sm:$0xff]
        %v417 = vld [vmem:[%s213 + $0x478] sm:$0xff]
        %v418 = vld [vmem:[%s213 + $0x480] sm:$0xff]
        %v419 = vld [vmem:[%s213 + $0x488] sm:$0xff]
        %v420 = vld [vmem:[%s213 + $0x490] sm:$0xff]
        %v421 = vld [vmem:[%s213 + $0x498] sm:$0xff]
        %v422 = vld [vmem:[%s213 + $0x4a0] sm:$0xff]
        %v423 = vld [vmem:[%s213 + $0x4a8] sm:$0xff]
        %v424 = vld [vmem:[%s213 + $0x4b0] sm:$0xff]
        %v425 = vld [vmem:[%s213 + $0x4b8] sm:$0xff]
        %v426 = vld [vmem:[%s213 + $0x4c0] sm:$0xff]
        %v427 = vld [vmem:[%s213 + $0x4c8] sm:$0xff]
        %v428 = vld [vmem:[%s213 + $0x4d0] sm:$0xff]
        %v429 = vld [vmem:[%s213 + $0x4d8] sm:$0xff]
        %v430 = vld [vmem:[%s213 + $0x4e0] sm:$0xff]
        %v431 = vld [vmem:[%s213 + $0x4e8] sm:$0xff]
        %v432 = vld [vmem:[%s213 + $0x4f0] sm:$0xff]
        %v433 = vld [vmem:[%s213 + $0x4f8] sm:$0xff]
        %v434 = vld [vmem:[%s213 + $0x500] sm:$0xff]
        %v435 = vld [vmem:[%s213 + $0x508] sm:$0xff]
        %v436 = vld [vmem:[%s213 + $0x510] sm:$0xff]
        %v437 = vld [vmem:[%s213 + $0x518] sm:$0xff]
        %v438 = vld [vmem:[%s213 + $0x520] sm:$0xff]
        %v439 = vld [vmem:[%s213 + $0x528] sm:$0xff]
        %v440 = vld [vmem:[%s213 + $0x530] sm:$0xff]
        %v441 = vld [vmem:[%s213 + $0x538] sm:$0xff]
        %v442 = vld [vmem:[%s213 + $0x540] sm:$0xff]
        %v443 = vld [vmem:[%s213 + $0x548] sm:$0xff]
        %v444 = vld [vmem:[%s213 + $0x550] sm:$0xff]
        %v445 = vld [vmem:[%s213 + $0x558] sm:$0xff]
        %v446 = vld [vmem:[%s213 + $0x560] sm:$0xff]
        %v447 = vld [vmem:[%s213 + $0x568] sm:$0xff]
        %v448 = vld [vmem:[%s213 + $0x570] sm:$0xff]
        %v449 = vld [vmem:[%s213 + $0x578] sm:$0xff]
        %v450 = vld [vmem:[%s213 + $0x580] sm:$0xff]
        %v451 = vld [vmem:[%s213 + $0x588] sm:$0xff]
        %v452 = vld [vmem:[%s213 + $0x590] sm:$0xff]
        %v453 = vld [vmem:[%s213 + $0x598] sm:$0xff]
        %v454 = vld [vmem:[%s213 + $0x5a0] sm:$0xff]
        %v455 = vld [vmem:[%s213 + $0x5a8] sm:$0xff]
        %v456 = vld [vmem:[%s213 + $0x5b0] sm:$0xff]
        %v457 = vld [vmem:[%s213 + $0x5b8] sm:$0xff]
        %v458 = vld [vmem:[%s213 + $0x5c0] sm:$0xff]
        %v459 = vld [vmem:[%s213 + $0x5c8] sm:$0xff]
        %v460 = vld [vmem:[%s213 + $0x5d0] sm:$0xff]
        %v461 = vld [vmem:[%s213 + $0x5d8] sm:$0xff]
        %v462 = vld [vmem:[%s213 + $0x5e0] sm:$0xff]
        %v463 = vld [vmem:[%s213 + $0x5e8] sm:$0xff]
        %v464 = vld [vmem:[%s213 + $0x5f0] sm:$0xff]
        %v465 = vld [vmem:[%s213 + $0x5f8] sm:$0xff]
        %v466 = vld [vmem:[%s213 + $0x600] sm:$0xff]
        %v467 = vld [vmem:[%s213 + $0x608] sm:$0xff]
        %v468 = vld [vmem:[%s213 + $0x610] sm:$0xff]
        %v469 = vld [vmem:[%s213 + $0x618] sm:$0xff]
        %v470 = vld [vmem:[%s213 + $0x620] sm:$0xff]
        %v471 = vld [vmem:[%s213 + $0x628] sm:$0xff]
        %v472 = vld [vmem:[%s213 + $0x630] sm:$0xff]
        %v473 = vld [vmem:[%s213 + $0x638] sm:$0xff]
        %v474 = vld [vmem:[%s213 + $0x640] sm:$0xff]
        %v475 = vld [vmem:[%s213 + $0x648] sm:$0xff]
        %v476 = vld [vmem:[%s213 + $0x650] sm:$0xff]
        %v477 = vld [vmem:[%s213 + $0x658] sm:$0xff]
        %v478 = vld [vmem:[%s213 + $0x660] sm:$0xff]
        %v479 = vld [vmem:[%s213 + $0x668] sm:$0xff]
        %v480 = vld [vmem:[%s213 + $0x670] sm:$0xff]
        %v481 = vld [vmem:[%s213 + $0x678] sm:$0xff]
        %v482 = vld [vmem:[%s213 + $0x680] sm:$0xff]
        %v483 = vld [vmem:[%s213 + $0x688] sm:$0xff]
        %v484 = vld [vmem:[%s213 + $0x690] sm:$0xff]
        %v485 = vld [vmem:[%s213 + $0x698] sm:$0xff]
        %v486 = vld [vmem:[%s213 + $0x6a0] sm:$0xff]
        %v487 = vld [vmem:[%s213 + $0x6a8] sm:$0xff]
        %v488 = vld [vmem:[%s213 + $0x6b0] sm:$0xff]
        %v489 = vld [vmem:[%s213 + $0x6b8] sm:$0xff]
        %v490 = vld [vmem:[%s213 + $0x6c0] sm:$0xff]
        %v491 = vld [vmem:[%s213 + $0x6c8] sm:$0xff]
        %v492 = vld [vmem:[%s213 + $0x6d0] sm:$0xff]
        %v493 = vld [vmem:[%s213 + $0x6d8] sm:$0xff]
        %v494 = vld [vmem:[%s213 + $0x6e0] sm:$0xff]
        %v495 = vld [vmem:[%s213 + $0x6e8] sm:$0xff]
        %v496 = vld [vmem:[%s213 + $0x6f0] sm:$0xff]
        %v497 = vld [vmem:[%s213 + $0x6f8] sm:$0xff]
        %v498 = vld [vmem:[%s213 + $0x700] sm:$0xff]
        %v499 = vld [vmem:[%s213 + $0x708] sm:$0xff]
        %v500 = vld [vmem:[%s213 + $0x710] sm:$0xff]
        %v501 = vld [vmem:[%s213 + $0x718] sm:$0xff]
        %v502 = vld [vmem:[%s213 + $0x720] sm:$0xff]
        %v503 = vld [vmem:[%s213 + $0x728] sm:$0xff]
        %v504 = vld [vmem:[%s213 + $0x730] sm:$0xff]
        %v505 = vld [vmem:[%s213 + $0x738] sm:$0xff]
        %v506 = vld [vmem:[%s213 + $0x740] sm:$0xff]
        %v507 = vld [vmem:[%s213 + $0x748] sm:$0xff]
        %v508 = vld [vmem:[%s213 + $0x750] sm:$0xff]
        %v509 = vld [vmem:[%s213 + $0x758] sm:$0xff]
        %v510 = vld [vmem:[%s213 + $0x760] sm:$0xff]
        %v511 = vld [vmem:[%s213 + $0x768] sm:$0xff]
        %v512 = vld [vmem:[%s213 + $0x770] sm:$0xff]
        %v513 = vld [vmem:[%s213 + $0x778] sm:$0xff]
        %v514 = vld [vmem:[%s213 + $0x780] sm:$0xff]
        %v515 = vld [vmem:[%s213 + $0x788] sm:$0xff]
        %v516 = vld [vmem:[%s213 + $0x790] sm:$0xff]
        %v517 = vld [vmem:[%s213 + $0x798] sm:$0xff]
        %v518 = vld [vmem:[%s213 + $0x7a0] sm:$0xff]
        %v519 = vld [vmem:[%s213 + $0x7a8] sm:$0xff]
        %v520 = vld [vmem:[%s213 + $0x7b0] sm:$0xff]
        %v521 = vld [vmem:[%s213 + $0x7b8] sm:$0xff]
        %v522 = vld [vmem:[%s213 + $0x7c0] sm:$0xff]
        %v523 = vld [vmem:[%s213 + $0x7c8] sm:$0xff]
        %v524 = vld [vmem:[%s213 + $0x7d0] sm:$0xff]
        %v525 = vld [vmem:[%s213 + $0x7d8] sm:$0xff]
        %v526 = vld [vmem:[%s213 + $0x7e0] sm:$0xff]
        %v527 = vld [vmem:[%s213 + $0x7e8] sm:$0xff]
        %v528 = vld [vmem:[%s213 + $0x7f0] sm:$0xff]
        %v529 = vld [vmem:[%s213 + $0x7f8] sm:$0xff]
        %v530 = vld [vmem:[%s222] sm:$0xf]
        %v532 = vlaneseq
        %v533 = vshrl.u32 %v532, 7
        %v534 = vsub.s32 0, %v533
        %v535 = vrot.slane %v530, %v534
        %v536 = vlaneseq
        %v537 = vshrl.u32 %v536, 7
        %v538 = vsub.s32 1, %v537
        %v539 = vrot.slane %v530, %v538
        %v540 = vlaneseq
        %v541 = vshrl.u32 %v540, 7
        %v542 = vsub.s32 2, %v541
        %v543 = vrot.slane %v530, %v542
        %v544 = vlaneseq
        %v545 = vshrl.u32 %v544, 7
        %v546 = vsub.s32 3, %v545
        %v547 = vrot.slane %v530, %v546
        %v560 = vunpack.c.l.b16 %v266
        %v561 = vunpack.c.h.b16 %v266
        %v562 = vunpack.c.l.b16 %v267
        %v563 = vunpack.c.h.b16 %v267
        %v564 = vunpack.c.l.b16 %v268
        %v565 = vunpack.c.h.b16 %v268
        %v566 = vunpack.c.l.b16 %v269
        %v567 = vunpack.c.h.b16 %v269
        %v568 = vunpack.c.l.b16 %v270
        %v569 = vunpack.c.h.b16 %v270
        %v570 = vunpack.c.l.b16 %v271
        %v571 = vunpack.c.h.b16 %v271
        %v572 = vunpack.c.l.b16 %v272
        %v573 = vunpack.c.h.b16 %v272
        %v574 = vunpack.c.l.b16 %v273
        %v575 = vunpack.c.h.b16 %v273
        %v576 = vpack.c.b16 %v568, %v560
        %v577 = vpack.c.b16 %v569, %v561
        %v578 = vpack.c.b16 %v570, %v562
        %v579 = vpack.c.b16 %v571, %v563
        %v580 = vpack.c.b16 %v572, %v564
        %v581 = vpack.c.b16 %v573, %v565
        %v582 = vpack.c.b16 %v574, %v566
        %v583 = vpack.c.b16 %v575, %v567
        %v848 = vunpack.c.l.b16 %v274
        %v849 = vunpack.c.h.b16 %v274
        %v850 = vunpack.c.l.b16 %v275
        %v851 = vunpack.c.h.b16 %v275
        %v852 = vunpack.c.l.b16 %v276
        %v853 = vunpack.c.h.b16 %v276
        %v854 = vunpack.c.l.b16 %v277
        %v855 = vunpack.c.h.b16 %v277
        %v856 = vunpack.c.l.b16 %v278
        %v857 = vunpack.c.h.b16 %v278
        %v858 = vunpack.c.l.b16 %v279
        %v859 = vunpack.c.h.b16 %v279
        %v860 = vunpack.c.l.b16 %v280
        %v861 = vunpack.c.h.b16 %v280
        %v862 = vunpack.c.l.b16 %v281
        %v863 = vunpack.c.h.b16 %v281
        %v864 = vunpack.c.l.b16 %v282
        %v865 = vunpack.c.h.b16 %v282
        %v866 = vunpack.c.l.b16 %v283
        %v867 = vunpack.c.h.b16 %v283
        %v868 = vunpack.c.l.b16 %v284
        %v869 = vunpack.c.h.b16 %v284
        %v870 = vunpack.c.l.b16 %v285
        %v871 = vunpack.c.h.b16 %v285
        %v872 = vunpack.c.l.b16 %v286
        %v873 = vunpack.c.h.b16 %v286
        %v874 = vunpack.c.l.b16 %v287
        %v875 = vunpack.c.h.b16 %v287
        %v876 = vunpack.c.l.b16 %v288
        %v877 = vunpack.c.h.b16 %v288
        %v878 = vunpack.c.l.b16 %v289
        %v879 = vunpack.c.h.b16 %v289
        %v880 = vunpack.c.l.b16 %v290
        %v881 = vunpack.c.h.b16 %v290
        %v882 = vunpack.c.l.b16 %v291
        %v883 = vunpack.c.h.b16 %v291
        %v884 = vunpack.c.l.b16 %v292
        %v885 = vunpack.c.h.b16 %v292
        %v886 = vunpack.c.l.b16 %v293
        %v887 = vunpack.c.h.b16 %v293
        %v888 = vunpack.c.l.b16 %v294
        %v889 = vunpack.c.h.b16 %v294
        %v890 = vunpack.c.l.b16 %v295
        %v891 = vunpack.c.h.b16 %v295
        %v892 = vunpack.c.l.b16 %v296
        %v893 = vunpack.c.h.b16 %v296
        %v894 = vunpack.c.l.b16 %v297
        %v895 = vunpack.c.h.b16 %v297
        %v896 = vunpack.c.l.b16 %v298
        %v897 = vunpack.c.h.b16 %v298
        %v898 = vunpack.c.l.b16 %v299
        %v899 = vunpack.c.h.b16 %v299
        %v900 = vunpack.c.l.b16 %v300
        %v901 = vunpack.c.h.b16 %v300
        %v902 = vunpack.c.l.b16 %v301
        %v903 = vunpack.c.h.b16 %v301
        %v904 = vunpack.c.l.b16 %v302
        %v905 = vunpack.c.h.b16 %v302
        %v906 = vunpack.c.l.b16 %v303
        %v907 = vunpack.c.h.b16 %v303
        %v908 = vunpack.c.l.b16 %v304
        %v909 = vunpack.c.h.b16 %v304
        %v910 = vunpack.c.l.b16 %v305
        %v911 = vunpack.c.h.b16 %v305
        %v912 = vunpack.c.l.b16 %v306
        %v913 = vunpack.c.h.b16 %v306
        %v914 = vunpack.c.l.b16 %v307
        %v915 = vunpack.c.h.b16 %v307
        %v916 = vunpack.c.l.b16 %v308
        %v917 = vunpack.c.h.b16 %v308
        %v918 = vunpack.c.l.b16 %v309
        %v919 = vunpack.c.h.b16 %v309
        %v920 = vunpack.c.l.b16 %v310
        %v921 = vunpack.c.h.b16 %v310
        %v922 = vunpack.c.l.b16 %v311
        %v923 = vunpack.c.h.b16 %v311
        %v924 = vunpack.c.l.b16 %v312
        %v925 = vunpack.c.h.b16 %v312
        %v926 = vunpack.c.l.b16 %v313
        %v927 = vunpack.c.h.b16 %v313
        %v928 = vunpack.c.l.b16 %v314
        %v929 = vunpack.c.h.b16 %v314
        %v930 = vunpack.c.l.b16 %v315
        %v931 = vunpack.c.h.b16 %v315
        %v932 = vunpack.c.l.b16 %v316
        %v933 = vunpack.c.h.b16 %v316
        %v934 = vunpack.c.l.b16 %v317
        %v935 = vunpack.c.h.b16 %v317
        %v936 = vunpack.c.l.b16 %v318
        %v937 = vunpack.c.h.b16 %v318
        %v938 = vunpack.c.l.b16 %v319
        %v939 = vunpack.c.h.b16 %v319
        %v940 = vunpack.c.l.b16 %v320
        %v941 = vunpack.c.h.b16 %v320
        %v942 = vunpack.c.l.b16 %v321
        %v943 = vunpack.c.h.b16 %v321
        %v944 = vunpack.c.l.b16 %v322
        %v945 = vunpack.c.h.b16 %v322
        %v946 = vunpack.c.l.b16 %v323
        %v947 = vunpack.c.h.b16 %v323
        %v948 = vunpack.c.l.b16 %v324
        %v949 = vunpack.c.h.b16 %v324
        %v950 = vunpack.c.l.b16 %v325
        %v951 = vunpack.c.h.b16 %v325
        %v952 = vunpack.c.l.b16 %v326
        %v953 = vunpack.c.h.b16 %v326
        %v954 = vunpack.c.l.b16 %v327
        %v955 = vunpack.c.h.b16 %v327
        %v956 = vunpack.c.l.b16 %v328
        %v957 = vunpack.c.h.b16 %v328
        %v958 = vunpack.c.l.b16 %v329
        %v959 = vunpack.c.h.b16 %v329
        %v960 = vunpack.c.l.b16 %v330
        %v961 = vunpack.c.h.b16 %v330
        %v962 = vunpack.c.l.b16 %v331
        %v963 = vunpack.c.h.b16 %v331
        %v964 = vunpack.c.l.b16 %v332
        %v965 = vunpack.c.h.b16 %v332
        %v966 = vunpack.c.l.b16 %v333
        %v967 = vunpack.c.h.b16 %v333
        %v968 = vunpack.c.l.b16 %v334
        %v969 = vunpack.c.h.b16 %v334
        %v970 = vunpack.c.l.b16 %v335
        %v971 = vunpack.c.h.b16 %v335
        %v972 = vunpack.c.l.b16 %v336
        %v973 = vunpack.c.h.b16 %v336
        %v974 = vunpack.c.l.b16 %v337
        %v975 = vunpack.c.h.b16 %v337
        %v976 = vunpack.c.l.b16 %v338
        %v977 = vunpack.c.h.b16 %v338
        %v978 = vunpack.c.l.b16 %v339
        %v979 = vunpack.c.h.b16 %v339
        %v980 = vunpack.c.l.b16 %v340
        %v981 = vunpack.c.h.b16 %v340
        %v982 = vunpack.c.l.b16 %v341
        %v983 = vunpack.c.h.b16 %v341
        %v984 = vunpack.c.l.b16 %v342
        %v985 = vunpack.c.h.b16 %v342
        %v986 = vunpack.c.l.b16 %v343
        %v987 = vunpack.c.h.b16 %v343
        %v988 = vunpack.c.l.b16 %v344
        %v989 = vunpack.c.h.b16 %v344
        %v990 = vunpack.c.l.b16 %v345
        %v991 = vunpack.c.h.b16 %v345
        %v992 = vunpack.c.l.b16 %v346
        %v993 = vunpack.c.h.b16 %v346
        %v994 = vunpack.c.l.b16 %v347
        %v995 = vunpack.c.h.b16 %v347
        %v996 = vunpack.c.l.b16 %v348
        %v997 = vunpack.c.h.b16 %v348
        %v998 = vunpack.c.l.b16 %v349
        %v999 = vunpack.c.h.b16 %v349
        %v1000 = vunpack.c.l.b16 %v350
        %v1001 = vunpack.c.h.b16 %v350
        %v1002 = vunpack.c.l.b16 %v351
        %v1003 = vunpack.c.h.b16 %v351
        %v1004 = vunpack.c.l.b16 %v352
        %v1005 = vunpack.c.h.b16 %v352
        %v1006 = vunpack.c.l.b16 %v353
        %v1007 = vunpack.c.h.b16 %v353
        %v1008 = vunpack.c.l.b16 %v354
        %v1009 = vunpack.c.h.b16 %v354
        %v1010 = vunpack.c.l.b16 %v355
        %v1011 = vunpack.c.h.b16 %v355
        %v1012 = vunpack.c.l.b16 %v356
        %v1013 = vunpack.c.h.b16 %v356
        %v1014 = vunpack.c.l.b16 %v357
        %v1015 = vunpack.c.h.b16 %v357
        %v1016 = vunpack.c.l.b16 %v358
        %v1017 = vunpack.c.h.b16 %v358
        %v1018 = vunpack.c.l.b16 %v359
        %v1019 = vunpack.c.h.b16 %v359
        %v1020 = vunpack.c.l.b16 %v360
        %v1021 = vunpack.c.h.b16 %v360
        %v1022 = vunpack.c.l.b16 %v361
        %v1023 = vunpack.c.h.b16 %v361
        %v1024 = vunpack.c.l.b16 %v362
        %v1025 = vunpack.c.h.b16 %v362
        %v1026 = vunpack.c.l.b16 %v363
        %v1027 = vunpack.c.h.b16 %v363
        %v1028 = vunpack.c.l.b16 %v364
        %v1029 = vunpack.c.h.b16 %v364
        %v1030 = vunpack.c.l.b16 %v365
        %v1031 = vunpack.c.h.b16 %v365
        %v1032 = vunpack.c.l.b16 %v366
        %v1033 = vunpack.c.h.b16 %v366
        %v1034 = vunpack.c.l.b16 %v367
        %v1035 = vunpack.c.h.b16 %v367
        %v1036 = vunpack.c.l.b16 %v368
        %v1037 = vunpack.c.h.b16 %v368
        %v1038 = vunpack.c.l.b16 %v369
        %v1039 = vunpack.c.h.b16 %v369
        %v1040 = vunpack.c.l.b16 %v370
        %v1041 = vunpack.c.h.b16 %v370
        %v1042 = vunpack.c.l.b16 %v371
        %v1043 = vunpack.c.h.b16 %v371
        %v1044 = vunpack.c.l.b16 %v372
        %v1045 = vunpack.c.h.b16 %v372
        %v1046 = vunpack.c.l.b16 %v373
        %v1047 = vunpack.c.h.b16 %v373
        %v1048 = vunpack.c.l.b16 %v374
        %v1049 = vunpack.c.h.b16 %v374
        %v1050 = vunpack.c.l.b16 %v375
        %v1051 = vunpack.c.h.b16 %v375
        %v1052 = vunpack.c.l.b16 %v376
        %v1053 = vunpack.c.h.b16 %v376
        %v1054 = vunpack.c.l.b16 %v377
        %v1055 = vunpack.c.h.b16 %v377
        %v1056 = vunpack.c.l.b16 %v378
        %v1057 = vunpack.c.h.b16 %v378
        %v1058 = vunpack.c.l.b16 %v379
        %v1059 = vunpack.c.h.b16 %v379
        %v1060 = vunpack.c.l.b16 %v380
        %v1061 = vunpack.c.h.b16 %v380
        %v1062 = vunpack.c.l.b16 %v381
        %v1063 = vunpack.c.h.b16 %v381
        %v1064 = vunpack.c.l.b16 %v382
        %v1065 = vunpack.c.h.b16 %v382
        %v1066 = vunpack.c.l.b16 %v383
        %v1067 = vunpack.c.h.b16 %v383
        %v1068 = vunpack.c.l.b16 %v384
        %v1069 = vunpack.c.h.b16 %v384
        %v1070 = vunpack.c.l.b16 %v385
        %v1071 = vunpack.c.h.b16 %v385
        %v1072 = vunpack.c.l.b16 %v386
        %v1073 = vunpack.c.h.b16 %v386
        %v1074 = vunpack.c.l.b16 %v387
        %v1075 = vunpack.c.h.b16 %v387
        %v1076 = vunpack.c.l.b16 %v388
        %v1077 = vunpack.c.h.b16 %v388
        %v1078 = vunpack.c.l.b16 %v389
        %v1079 = vunpack.c.h.b16 %v389
        %v1080 = vunpack.c.l.b16 %v390
        %v1081 = vunpack.c.h.b16 %v390
        %v1082 = vunpack.c.l.b16 %v391
        %v1083 = vunpack.c.h.b16 %v391
        %v1084 = vunpack.c.l.b16 %v392
        %v1085 = vunpack.c.h.b16 %v392
        %v1086 = vunpack.c.l.b16 %v393
        %v1087 = vunpack.c.h.b16 %v393
        %v1088 = vunpack.c.l.b16 %v394
        %v1089 = vunpack.c.h.b16 %v394
        %v1090 = vunpack.c.l.b16 %v395
        %v1091 = vunpack.c.h.b16 %v395
        %v1092 = vunpack.c.l.b16 %v396
        %v1093 = vunpack.c.h.b16 %v396
        %v1094 = vunpack.c.l.b16 %v397
        %v1095 = vunpack.c.h.b16 %v397
        %v1096 = vunpack.c.l.b16 %v398
        %v1097 = vunpack.c.h.b16 %v398
        %v1098 = vunpack.c.l.b16 %v399
        %v1099 = vunpack.c.h.b16 %v399
        %v1100 = vunpack.c.l.b16 %v400
        %v1101 = vunpack.c.h.b16 %v400
        %v1102 = vunpack.c.l.b16 %v401
        %v1103 = vunpack.c.h.b16 %v401
        %v1104 = vunpack.c.l.b16 %v402
        %v1105 = vunpack.c.h.b16 %v402
        %v1106 = vunpack.c.l.b16 %v403
        %v1107 = vunpack.c.h.b16 %v403
        %v1108 = vunpack.c.l.b16 %v404
        %v1109 = vunpack.c.h.b16 %v404
        %v1110 = vunpack.c.l.b16 %v405
        %v1111 = vunpack.c.h.b16 %v405
        %v1112 = vunpack.c.l.b16 %v406
        %v1113 = vunpack.c.h.b16 %v406
        %v1114 = vunpack.c.l.b16 %v407
        %v1115 = vunpack.c.h.b16 %v407
        %v1116 = vunpack.c.l.b16 %v408
        %v1117 = vunpack.c.h.b16 %v408
        %v1118 = vunpack.c.l.b16 %v409
        %v1119 = vunpack.c.h.b16 %v409
        %v1120 = vunpack.c.l.b16 %v410
        %v1121 = vunpack.c.h.b16 %v410
        %v1122 = vunpack.c.l.b16 %v411
        %v1123 = vunpack.c.h.b16 %v411
        %v1124 = vunpack.c.l.b16 %v412
        %v1125 = vunpack.c.h.b16 %v412
        %v1126 = vunpack.c.l.b16 %v413
        %v1127 = vunpack.c.h.b16 %v413
        %v1128 = vunpack.c.l.b16 %v414
        %v1129 = vunpack.c.h.b16 %v414
        %v1130 = vunpack.c.l.b16 %v415
        %v1131 = vunpack.c.h.b16 %v415
        %v1132 = vunpack.c.l.b16 %v416
        %v1133 = vunpack.c.h.b16 %v416
        %v1134 = vunpack.c.l.b16 %v417
        %v1135 = vunpack.c.h.b16 %v417
        %v1136 = vunpack.c.l.b16 %v418
        %v1137 = vunpack.c.h.b16 %v418
        %v1138 = vunpack.c.l.b16 %v419
        %v1139 = vunpack.c.h.b16 %v419
        %v1140 = vunpack.c.l.b16 %v420
        %v1141 = vunpack.c.h.b16 %v420
        %v1142 = vunpack.c.l.b16 %v421
        %v1143 = vunpack.c.h.b16 %v421
        %v1144 = vunpack.c.l.b16 %v422
        %v1145 = vunpack.c.h.b16 %v422
        %v1146 = vunpack.c.l.b16 %v423
        %v1147 = vunpack.c.h.b16 %v423
        %v1148 = vunpack.c.l.b16 %v424
        %v1149 = vunpack.c.h.b16 %v424
        %v1150 = vunpack.c.l.b16 %v425
        %v1151 = vunpack.c.h.b16 %v425
        %v1152 = vunpack.c.l.b16 %v426
        %v1153 = vunpack.c.h.b16 %v426
        %v1154 = vunpack.c.l.b16 %v427
        %v1155 = vunpack.c.h.b16 %v427
        %v1156 = vunpack.c.l.b16 %v428
        %v1157 = vunpack.c.h.b16 %v428
        %v1158 = vunpack.c.l.b16 %v429
        %v1159 = vunpack.c.h.b16 %v429
        %v1160 = vunpack.c.l.b16 %v430
        %v1161 = vunpack.c.h.b16 %v430
        %v1162 = vunpack.c.l.b16 %v431
        %v1163 = vunpack.c.h.b16 %v431
        %v1164 = vunpack.c.l.b16 %v432
        %v1165 = vunpack.c.h.b16 %v432
        %v1166 = vunpack.c.l.b16 %v433
        %v1167 = vunpack.c.h.b16 %v433
        %v1168 = vunpack.c.l.b16 %v434
        %v1169 = vunpack.c.h.b16 %v434
        %v1170 = vunpack.c.l.b16 %v435
        %v1171 = vunpack.c.h.b16 %v435
        %v1172 = vunpack.c.l.b16 %v436
        %v1173 = vunpack.c.h.b16 %v436
        %v1174 = vunpack.c.l.b16 %v437
        %v1175 = vunpack.c.h.b16 %v437
        %v1176 = vunpack.c.l.b16 %v438
        %v1177 = vunpack.c.h.b16 %v438
        %v1178 = vunpack.c.l.b16 %v439
        %v1179 = vunpack.c.h.b16 %v439
        %v1180 = vunpack.c.l.b16 %v440
        %v1181 = vunpack.c.h.b16 %v440
        %v1182 = vunpack.c.l.b16 %v441
        %v1183 = vunpack.c.h.b16 %v441
        %v1184 = vunpack.c.l.b16 %v442
        %v1185 = vunpack.c.h.b16 %v442
        %v1186 = vunpack.c.l.b16 %v443
        %v1187 = vunpack.c.h.b16 %v443
        %v1188 = vunpack.c.l.b16 %v444
        %v1189 = vunpack.c.h.b16 %v444
        %v1190 = vunpack.c.l.b16 %v445
        %v1191 = vunpack.c.h.b16 %v445
        %v1192 = vunpack.c.l.b16 %v446
        %v1193 = vunpack.c.h.b16 %v446
        %v1194 = vunpack.c.l.b16 %v447
        %v1195 = vunpack.c.h.b16 %v447
        %v1196 = vunpack.c.l.b16 %v448
        %v1197 = vunpack.c.h.b16 %v448
        %v1198 = vunpack.c.l.b16 %v449
        %v1199 = vunpack.c.h.b16 %v449
        %v1200 = vunpack.c.l.b16 %v450
        %v1201 = vunpack.c.h.b16 %v450
        %v1202 = vunpack.c.l.b16 %v451
        %v1203 = vunpack.c.h.b16 %v451
        %v1204 = vunpack.c.l.b16 %v452
        %v1205 = vunpack.c.h.b16 %v452
        %v1206 = vunpack.c.l.b16 %v453
        %v1207 = vunpack.c.h.b16 %v453
        %v1208 = vunpack.c.l.b16 %v454
        %v1209 = vunpack.c.h.b16 %v454
        %v1210 = vunpack.c.l.b16 %v455
        %v1211 = vunpack.c.h.b16 %v455
        %v1212 = vunpack.c.l.b16 %v456
        %v1213 = vunpack.c.h.b16 %v456
        %v1214 = vunpack.c.l.b16 %v457
        %v1215 = vunpack.c.h.b16 %v457
        %v1216 = vunpack.c.l.b16 %v458
        %v1217 = vunpack.c.h.b16 %v458
        %v1218 = vunpack.c.l.b16 %v459
        %v1219 = vunpack.c.h.b16 %v459
        %v1220 = vunpack.c.l.b16 %v460
        %v1221 = vunpack.c.h.b16 %v460
        %v1222 = vunpack.c.l.b16 %v461
        %v1223 = vunpack.c.h.b16 %v461
        %v1224 = vunpack.c.l.b16 %v462
        %v1225 = vunpack.c.h.b16 %v462
        %v1226 = vunpack.c.l.b16 %v463
        %v1227 = vunpack.c.h.b16 %v463
        %v1228 = vunpack.c.l.b16 %v464
        %v1229 = vunpack.c.h.b16 %v464
        %v1230 = vunpack.c.l.b16 %v465
        %v1231 = vunpack.c.h.b16 %v465
        %v1232 = vunpack.c.l.b16 %v466
        %v1233 = vunpack.c.h.b16 %v466
        %v1234 = vunpack.c.l.b16 %v467
        %v1235 = vunpack.c.h.b16 %v467
        %v1236 = vunpack.c.l.b16 %v468
        %v1237 = vunpack.c.h.b16 %v468
        %v1238 = vunpack.c.l.b16 %v469
        %v1239 = vunpack.c.h.b16 %v469
        %v1240 = vunpack.c.l.b16 %v470
        %v1241 = vunpack.c.h.b16 %v470
        %v1242 = vunpack.c.l.b16 %v471
        %v1243 = vunpack.c.h.b16 %v471
        %v1244 = vunpack.c.l.b16 %v472
        %v1245 = vunpack.c.h.b16 %v472
        %v1246 = vunpack.c.l.b16 %v473
        %v1247 = vunpack.c.h.b16 %v473
        %v1248 = vunpack.c.l.b16 %v474
        %v1249 = vunpack.c.h.b16 %v474
        %v1250 = vunpack.c.l.b16 %v475
        %v1251 = vunpack.c.h.b16 %v475
        %v1252 = vunpack.c.l.b16 %v476
        %v1253 = vunpack.c.h.b16 %v476
        %v1254 = vunpack.c.l.b16 %v477
        %v1255 = vunpack.c.h.b16 %v477
        %v1256 = vunpack.c.l.b16 %v478
        %v1257 = vunpack.c.h.b16 %v478
        %v1258 = vunpack.c.l.b16 %v479
        %v1259 = vunpack.c.h.b16 %v479
        %v1260 = vunpack.c.l.b16 %v480
        %v1261 = vunpack.c.h.b16 %v480
        %v1262 = vunpack.c.l.b16 %v481
        %v1263 = vunpack.c.h.b16 %v481
        %v1264 = vunpack.c.l.b16 %v482
        %v1265 = vunpack.c.h.b16 %v482
        %v1266 = vunpack.c.l.b16 %v483
        %v1267 = vunpack.c.h.b16 %v483
        %v1268 = vunpack.c.l.b16 %v484
        %v1269 = vunpack.c.h.b16 %v484
        %v1270 = vunpack.c.l.b16 %v485
        %v1271 = vunpack.c.h.b16 %v485
        %v1272 = vunpack.c.l.b16 %v486
        %v1273 = vunpack.c.h.b16 %v486
        %v1274 = vunpack.c.l.b16 %v487
        %v1275 = vunpack.c.h.b16 %v487
        %v1276 = vunpack.c.l.b16 %v488
        %v1277 = vunpack.c.h.b16 %v488
        %v1278 = vunpack.c.l.b16 %v489
        %v1279 = vunpack.c.h.b16 %v489
        %v1280 = vunpack.c.l.b16 %v490
        %v1281 = vunpack.c.h.b16 %v490
        %v1282 = vunpack.c.l.b16 %v491
        %v1283 = vunpack.c.h.b16 %v491
        %v1284 = vunpack.c.l.b16 %v492
        %v1285 = vunpack.c.h.b16 %v492
        %v1286 = vunpack.c.l.b16 %v493
        %v1287 = vunpack.c.h.b16 %v493
        %v1288 = vunpack.c.l.b16 %v494
        %v1289 = vunpack.c.h.b16 %v494
        %v1290 = vunpack.c.l.b16 %v495
        %v1291 = vunpack.c.h.b16 %v495
        %v1292 = vunpack.c.l.b16 %v496
        %v1293 = vunpack.c.h.b16 %v496
        %v1294 = vunpack.c.l.b16 %v497
        %v1295 = vunpack.c.h.b16 %v497
        %v1296 = vunpack.c.l.b16 %v498
        %v1297 = vunpack.c.h.b16 %v498
        %v1298 = vunpack.c.l.b16 %v499
        %v1299 = vunpack.c.h.b16 %v499
        %v1300 = vunpack.c.l.b16 %v500
        %v1301 = vunpack.c.h.b16 %v500
        %v1302 = vunpack.c.l.b16 %v501
        %v1303 = vunpack.c.h.b16 %v501
        %v1304 = vunpack.c.l.b16 %v502
        %v1305 = vunpack.c.h.b16 %v502
        %v1306 = vunpack.c.l.b16 %v503
        %v1307 = vunpack.c.h.b16 %v503
        %v1308 = vunpack.c.l.b16 %v504
        %v1309 = vunpack.c.h.b16 %v504
        %v1310 = vunpack.c.l.b16 %v505
        %v1311 = vunpack.c.h.b16 %v505
        %v1312 = vunpack.c.l.b16 %v506
        %v1313 = vunpack.c.h.b16 %v506
        %v1314 = vunpack.c.l.b16 %v507
        %v1315 = vunpack.c.h.b16 %v507
        %v1316 = vunpack.c.l.b16 %v508
        %v1317 = vunpack.c.h.b16 %v508
        %v1318 = vunpack.c.l.b16 %v509
        %v1319 = vunpack.c.h.b16 %v509
        %v1320 = vunpack.c.l.b16 %v510
        %v1321 = vunpack.c.h.b16 %v510
        %v1322 = vunpack.c.l.b16 %v511
        %v1323 = vunpack.c.h.b16 %v511
        %v1324 = vunpack.c.l.b16 %v512
        %v1325 = vunpack.c.h.b16 %v512
        %v1326 = vunpack.c.l.b16 %v513
        %v1327 = vunpack.c.h.b16 %v513
        %v1328 = vunpack.c.l.b16 %v514
        %v1329 = vunpack.c.h.b16 %v514
        %v1330 = vunpack.c.l.b16 %v515
        %v1331 = vunpack.c.h.b16 %v515
        %v1332 = vunpack.c.l.b16 %v516
        %v1333 = vunpack.c.h.b16 %v516
        %v1334 = vunpack.c.l.b16 %v517
        %v1335 = vunpack.c.h.b16 %v517
        %v1336 = vunpack.c.l.b16 %v518
        %v1337 = vunpack.c.h.b16 %v518
        %v1338 = vunpack.c.l.b16 %v519
        %v1339 = vunpack.c.h.b16 %v519
        %v1340 = vunpack.c.l.b16 %v520
        %v1341 = vunpack.c.h.b16 %v520
        %v1342 = vunpack.c.l.b16 %v521
        %v1343 = vunpack.c.h.b16 %v521
        %v1344 = vunpack.c.l.b16 %v522
        %v1345 = vunpack.c.h.b16 %v522
        %v1346 = vunpack.c.l.b16 %v523
        %v1347 = vunpack.c.h.b16 %v523
        %v1348 = vunpack.c.l.b16 %v524
        %v1349 = vunpack.c.h.b16 %v524
        %v1350 = vunpack.c.l.b16 %v525
        %v1351 = vunpack.c.h.b16 %v525
        %v1352 = vunpack.c.l.b16 %v526
        %v1353 = vunpack.c.h.b16 %v526
        %v1354 = vunpack.c.l.b16 %v527
        %v1355 = vunpack.c.h.b16 %v527
        %v1356 = vunpack.c.l.b16 %v528
        %v1357 = vunpack.c.h.b16 %v528
        %v1358 = vunpack.c.l.b16 %v529
        %v1359 = vunpack.c.h.b16 %v529
        %v1360 = vpack.c.b16 %v852, %v848
        %v1361 = vpack.c.b16 %v853, %v849
        %v1362 = vpack.c.b16 %v854, %v850
        %v1363 = vpack.c.b16 %v855, %v851
        %v1364 = vpack.c.b16 %v860, %v856
        %v1365 = vpack.c.b16 %v861, %v857
        %v1366 = vpack.c.b16 %v862, %v858
        %v1367 = vpack.c.b16 %v863, %v859
        %v1368 = vpack.c.b16 %v868, %v864
        %v1369 = vpack.c.b16 %v869, %v865
        %v1370 = vpack.c.b16 %v870, %v866
        %v1371 = vpack.c.b16 %v871, %v867
        %v1372 = vpack.c.b16 %v876, %v872
        %v1373 = vpack.c.b16 %v877, %v873
        %v1374 = vpack.c.b16 %v878, %v874
        %v1375 = vpack.c.b16 %v879, %v875
        %v1376 = vpack.c.b16 %v884, %v880
        %v1377 = vpack.c.b16 %v885, %v881
        %v1378 = vpack.c.b16 %v886, %v882
        %v1379 = vpack.c.b16 %v887, %v883
        %v1380 = vpack.c.b16 %v892, %v888
        %v1381 = vpack.c.b16 %v893, %v889
        %v1382 = vpack.c.b16 %v894, %v890
        %v1383 = vpack.c.b16 %v895, %v891
        %v1384 = vpack.c.b16 %v900, %v896
        %v1385 = vpack.c.b16 %v901, %v897
        %v1386 = vpack.c.b16 %v902, %v898
        %v1387 = vpack.c.b16 %v903, %v899
        %v1388 = vpack.c.b16 %v908, %v904
        %v1389 = vpack.c.b16 %v909, %v905
        %v1390 = vpack.c.b16 %v910, %v906
        %v1391 = vpack.c.b16 %v911, %v907
        %v1392 = vpack.c.b16 %v916, %v912
        %v1393 = vpack.c.b16 %v917, %v913
        %v1394 = vpack.c.b16 %v918, %v914
        %v1395 = vpack.c.b16 %v919, %v915
        %v1396 = vpack.c.b16 %v924, %v920
        %v1397 = vpack.c.b16 %v925, %v921
        %v1398 = vpack.c.b16 %v926, %v922
        %v1399 = vpack.c.b16 %v927, %v923
        %v1400 = vpack.c.b16 %v932, %v928
        %v1401 = vpack.c.b16 %v933, %v929
        %v1402 = vpack.c.b16 %v934, %v930
        %v1403 = vpack.c.b16 %v935, %v931
        %v1404 = vpack.c.b16 %v940, %v936
        %v1405 = vpack.c.b16 %v941, %v937
        %v1406 = vpack.c.b16 %v942, %v938
        %v1407 = vpack.c.b16 %v943, %v939
        %v1408 = vpack.c.b16 %v948, %v944
        %v1409 = vpack.c.b16 %v949, %v945
        %v1410 = vpack.c.b16 %v950, %v946
        %v1411 = vpack.c.b16 %v951, %v947
        %v1412 = vpack.c.b16 %v956, %v952
        %v1413 = vpack.c.b16 %v957, %v953
        %v1414 = vpack.c.b16 %v958, %v954
        %v1415 = vpack.c.b16 %v959, %v955
        %v1416 = vpack.c.b16 %v964, %v960
        %v1417 = vpack.c.b16 %v965, %v961
        %v1418 = vpack.c.b16 %v966, %v962
        %v1419 = vpack.c.b16 %v967, %v963
        %v1420 = vpack.c.b16 %v972, %v968
        %v1421 = vpack.c.b16 %v973, %v969
        %v1422 = vpack.c.b16 %v974, %v970
        %v1423 = vpack.c.b16 %v975, %v971
        %v1424 = vpack.c.b16 %v980, %v976
        %v1425 = vpack.c.b16 %v981, %v977
        %v1426 = vpack.c.b16 %v982, %v978
        %v1427 = vpack.c.b16 %v983, %v979
        %v1428 = vpack.c.b16 %v988, %v984
        %v1429 = vpack.c.b16 %v989, %v985
        %v1430 = vpack.c.b16 %v990, %v986
        %v1431 = vpack.c.b16 %v991, %v987
        %v1432 = vpack.c.b16 %v996, %v992
        %v1433 = vpack.c.b16 %v997, %v993
        %v1434 = vpack.c.b16 %v998, %v994
        %v1435 = vpack.c.b16 %v999, %v995
        %v1436 = vpack.c.b16 %v1004, %v1000
        %v1437 = vpack.c.b16 %v1005, %v1001
        %v1438 = vpack.c.b16 %v1006, %v1002
        %v1439 = vpack.c.b16 %v1007, %v1003
        %v1440 = vpack.c.b16 %v1012, %v1008
        %v1441 = vpack.c.b16 %v1013, %v1009
        %v1442 = vpack.c.b16 %v1014, %v1010
        %v1443 = vpack.c.b16 %v1015, %v1011
        %v1444 = vpack.c.b16 %v1020, %v1016
        %v1445 = vpack.c.b16 %v1021, %v1017
        %v1446 = vpack.c.b16 %v1022, %v1018
        %v1447 = vpack.c.b16 %v1023, %v1019
        %v1448 = vpack.c.b16 %v1028, %v1024
        %v1449 = vpack.c.b16 %v1029, %v1025
        %v1450 = vpack.c.b16 %v1030, %v1026
        %v1451 = vpack.c.b16 %v1031, %v1027
        %v1452 = vpack.c.b16 %v1036, %v1032
        %v1453 = vpack.c.b16 %v1037, %v1033
        %v1454 = vpack.c.b16 %v1038, %v1034
        %v1455 = vpack.c.b16 %v1039, %v1035
        %v1456 = vpack.c.b16 %v1044, %v1040
        %v1457 = vpack.c.b16 %v1045, %v1041
        %v1458 = vpack.c.b16 %v1046, %v1042
        %v1459 = vpack.c.b16 %v1047, %v1043
        %v1460 = vpack.c.b16 %v1052, %v1048
        %v1461 = vpack.c.b16 %v1053, %v1049
        %v1462 = vpack.c.b16 %v1054, %v1050
        %v1463 = vpack.c.b16 %v1055, %v1051
        %v1464 = vpack.c.b16 %v1060, %v1056
        %v1465 = vpack.c.b16 %v1061, %v1057
        %v1466 = vpack.c.b16 %v1062, %v1058
        %v1467 = vpack.c.b16 %v1063, %v1059
        %v1468 = vpack.c.b16 %v1068, %v1064
        %v1469 = vpack.c.b16 %v1069, %v1065
        %v1470 = vpack.c.b16 %v1070, %v1066
        %v1471 = vpack.c.b16 %v1071, %v1067
        %v1472 = vpack.c.b16 %v1076, %v1072
        %v1473 = vpack.c.b16 %v1077, %v1073
        %v1474 = vpack.c.b16 %v1078, %v1074
        %v1475 = vpack.c.b16 %v1079, %v1075
        %v1476 = vpack.c.b16 %v1084, %v1080
        %v1477 = vpack.c.b16 %v1085, %v1081
        %v1478 = vpack.c.b16 %v1086, %v1082
        %v1479 = vpack.c.b16 %v1087, %v1083
        %v1480 = vpack.c.b16 %v1092, %v1088
        %v1481 = vpack.c.b16 %v1093, %v1089
        %v1482 = vpack.c.b16 %v1094, %v1090
        %v1483 = vpack.c.b16 %v1095, %v1091
        %v1484 = vpack.c.b16 %v1100, %v1096
        %v1485 = vpack.c.b16 %v1101, %v1097
        %v1486 = vpack.c.b16 %v1102, %v1098
        %v1487 = vpack.c.b16 %v1103, %v1099
        %v1488 = vpack.c.b16 %v1108, %v1104
        %v1489 = vpack.c.b16 %v1109, %v1105
        %v1490 = vpack.c.b16 %v1110, %v1106
        %v1491 = vpack.c.b16 %v1111, %v1107
        %v1492 = vpack.c.b16 %v1116, %v1112
        %v1493 = vpack.c.b16 %v1117, %v1113
        %v1494 = vpack.c.b16 %v1118, %v1114
        %v1495 = vpack.c.b16 %v1119, %v1115
        %v1496 = vpack.c.b16 %v1124, %v1120
        %v1497 = vpack.c.b16 %v1125, %v1121
        %v1498 = vpack.c.b16 %v1126, %v1122
        %v1499 = vpack.c.b16 %v1127, %v1123
        %v1500 = vpack.c.b16 %v1132, %v1128
        %v1501 = vpack.c.b16 %v1133, %v1129
        %v1502 = vpack.c.b16 %v1134, %v1130
        %v1503 = vpack.c.b16 %v1135, %v1131
        %v1504 = vpack.c.b16 %v1140, %v1136
        %v1505 = vpack.c.b16 %v1141, %v1137
        %v1506 = vpack.c.b16 %v1142, %v1138
        %v1507 = vpack.c.b16 %v1143, %v1139
        %v1508 = vpack.c.b16 %v1148, %v1144
        %v1509 = vpack.c.b16 %v1149, %v1145
        %v1510 = vpack.c.b16 %v1150, %v1146
        %v1511 = vpack.c.b16 %v1151, %v1147
        %v1512 = vpack.c.b16 %v1156, %v1152
        %v1513 = vpack.c.b16 %v1157, %v1153
        %v1514 = vpack.c.b16 %v1158, %v1154
        %v1515 = vpack.c.b16 %v1159, %v1155
        %v1516 = vpack.c.b16 %v1164, %v1160
        %v1517 = vpack.c.b16 %v1165, %v1161
        %v1518 = vpack.c.b16 %v1166, %v1162
        %v1519 = vpack.c.b16 %v1167, %v1163
        %v1520 = vpack.c.b16 %v1172, %v1168
        %v1521 = vpack.c.b16 %v1173, %v1169
        %v1522 = vpack.c.b16 %v1174, %v1170
        %v1523 = vpack.c.b16 %v1175, %v1171
        %v1524 = vpack.c.b16 %v1180, %v1176
        %v1525 = vpack.c.b16 %v1181, %v1177
        %v1526 = vpack.c.b16 %v1182, %v1178
        %v1527 = vpack.c.b16 %v1183, %v1179
        %v1528 = vpack.c.b16 %v1188, %v1184
        %v1529 = vpack.c.b16 %v1189, %v1185
        %v1530 = vpack.c.b16 %v1190, %v1186
        %v1531 = vpack.c.b16 %v1191, %v1187
        %v1532 = vpack.c.b16 %v1196, %v1192
        %v1533 = vpack.c.b16 %v1197, %v1193
        %v1534 = vpack.c.b16 %v1198, %v1194
        %v1535 = vpack.c.b16 %v1199, %v1195
        %v1536 = vpack.c.b16 %v1204, %v1200
        %v1537 = vpack.c.b16 %v1205, %v1201
        %v1538 = vpack.c.b16 %v1206, %v1202
        %v1539 = vpack.c.b16 %v1207, %v1203
        %v1540 = vpack.c.b16 %v1212, %v1208
        %v1541 = vpack.c.b16 %v1213, %v1209
        %v1542 = vpack.c.b16 %v1214, %v1210
        %v1543 = vpack.c.b16 %v1215, %v1211
        %v1544 = vpack.c.b16 %v1220, %v1216
        %v1545 = vpack.c.b16 %v1221, %v1217
        %v1546 = vpack.c.b16 %v1222, %v1218
        %v1547 = vpack.c.b16 %v1223, %v1219
        %v1548 = vpack.c.b16 %v1228, %v1224
        %v1549 = vpack.c.b16 %v1229, %v1225
        %v1550 = vpack.c.b16 %v1230, %v1226
        %v1551 = vpack.c.b16 %v1231, %v1227
        %v1552 = vpack.c.b16 %v1236, %v1232
        %v1553 = vpack.c.b16 %v1237, %v1233
        %v1554 = vpack.c.b16 %v1238, %v1234
        %v1555 = vpack.c.b16 %v1239, %v1235
        %v1556 = vpack.c.b16 %v1244, %v1240
        %v1557 = vpack.c.b16 %v1245, %v1241
        %v1558 = vpack.c.b16 %v1246, %v1242
        %v1559 = vpack.c.b16 %v1247, %v1243
        %v1560 = vpack.c.b16 %v1252, %v1248
        %v1561 = vpack.c.b16 %v1253, %v1249
        %v1562 = vpack.c.b16 %v1254, %v1250
        %v1563 = vpack.c.b16 %v1255, %v1251
        %v1564 = vpack.c.b16 %v1260, %v1256
        %v1565 = vpack.c.b16 %v1261, %v1257
        %v1566 = vpack.c.b16 %v1262, %v1258
        %v1567 = vpack.c.b16 %v1263, %v1259
        %v1568 = vpack.c.b16 %v1268, %v1264
        %v1569 = vpack.c.b16 %v1269, %v1265
        %v1570 = vpack.c.b16 %v1270, %v1266
        %v1571 = vpack.c.b16 %v1271, %v1267
        %v1572 = vpack.c.b16 %v1276, %v1272
        %v1573 = vpack.c.b16 %v1277, %v1273
        %v1574 = vpack.c.b16 %v1278, %v1274
        %v1575 = vpack.c.b16 %v1279, %v1275
        %v1576 = vpack.c.b16 %v1284, %v1280
        %v1577 = vpack.c.b16 %v1285, %v1281
        %v1578 = vpack.c.b16 %v1286, %v1282
        %v1579 = vpack.c.b16 %v1287, %v1283
        %v1580 = vpack.c.b16 %v1292, %v1288
        %v1581 = vpack.c.b16 %v1293, %v1289
        %v1582 = vpack.c.b16 %v1294, %v1290
        %v1583 = vpack.c.b16 %v1295, %v1291
        %v1584 = vpack.c.b16 %v1300, %v1296
        %v1585 = vpack.c.b16 %v1301, %v1297
        %v1586 = vpack.c.b16 %v1302, %v1298
        %v1587 = vpack.c.b16 %v1303, %v1299
        %v1588 = vpack.c.b16 %v1308, %v1304
        %v1589 = vpack.c.b16 %v1309, %v1305
        %v1590 = vpack.c.b16 %v1310, %v1306
        %v1591 = vpack.c.b16 %v1311, %v1307
        %v1592 = vpack.c.b16 %v1316, %v1312
        %v1593 = vpack.c.b16 %v1317, %v1313
        %v1594 = vpack.c.b16 %v1318, %v1314
        %v1595 = vpack.c.b16 %v1319, %v1315
        %v1596 = vpack.c.b16 %v1324, %v1320
        %v1597 = vpack.c.b16 %v1325, %v1321
        %v1598 = vpack.c.b16 %v1326, %v1322
        %v1599 = vpack.c.b16 %v1327, %v1323
        %v1600 = vpack.c.b16 %v1332, %v1328
        %v1601 = vpack.c.b16 %v1333, %v1329
        %v1602 = vpack.c.b16 %v1334, %v1330
        %v1603 = vpack.c.b16 %v1335, %v1331
        %v1604 = vpack.c.b16 %v1340, %v1336
        %v1605 = vpack.c.b16 %v1341, %v1337
        %v1606 = vpack.c.b16 %v1342, %v1338
        %v1607 = vpack.c.b16 %v1343, %v1339
        %v1608 = vpack.c.b16 %v1348, %v1344
        %v1609 = vpack.c.b16 %v1349, %v1345
        %v1610 = vpack.c.b16 %v1350, %v1346
        %v1611 = vpack.c.b16 %v1351, %v1347
        %v1612 = vpack.c.b16 %v1356, %v1352
        %v1613 = vpack.c.b16 %v1357, %v1353
        %v1614 = vpack.c.b16 %v1358, %v1354
        %v1615 = vpack.c.b16 %v1359, %v1355
        %1872 = vmatprep.subr.bf16.mxu0 %v1361
        %1873 = vmatpush1.bf16.msra.mxu0 %v1360
        %1874 = vmatprep.subr.bf16.mxu0 %v1365
        %1875 = vmatpush1.bf16.msra.mxu0 %v1364
        %1876 = vmatprep.subr.bf16.mxu0 %v1369
        %1877 = vmatpush1.bf16.msra.mxu0 %v1368
        %1878 = vmatprep.subr.bf16.mxu0 %v1373
        %1879 = vmatpush1.bf16.msra.mxu0 %v1372
        %1880 = vmatprep.subr.bf16.mxu0 %v1377
        %1881 = vmatpush1.bf16.msra.mxu0 %v1376
        %1882 = vmatprep.subr.bf16.mxu0 %v1381
        %1883 = vmatpush1.bf16.msra.mxu0 %v1380
        %1884 = vmatprep.subr.bf16.mxu0 %v1385
        %1885 = vmatpush1.bf16.msra.mxu0 %v1384
        %1886 = vmatprep.subr.bf16.mxu0 %v1389
        %1887 = vmatpush1.bf16.msra.mxu0 %v1388
        %1888 = vmatprep.subr.bf16.mxu0 %v1393
        %1889 = vmatpush1.bf16.msra.mxu0 %v1392
        %1890 = vmatprep.subr.bf16.mxu0 %v1397
        %1891 = vmatpush1.bf16.msra.mxu0 %v1396
        %1892 = vmatprep.subr.bf16.mxu0 %v1401
        %1893 = vmatpush1.bf16.msra.mxu0 %v1400
        %1894 = vmatprep.subr.bf16.mxu0 %v1405
        %1895 = vmatpush1.bf16.msra.mxu0 %v1404
        %1896 = vmatprep.subr.bf16.mxu0 %v1409
        %1897 = vmatpush1.bf16.msra.mxu0 %v1408
        %1898 = vmatprep.subr.bf16.mxu0 %v1413
        %1899 = vmatpush1.bf16.msra.mxu0 %v1412
        %1900 = vmatprep.subr.bf16.mxu0 %v1417
        %1901 = vmatpush1.bf16.msra.mxu0 %v1416
        %1902 = vmatprep.subr.bf16.mxu0 %v1421
        %1903 = vmatpush1.bf16.msra.mxu0 %v1420
        %1904 = vmatprep.mubr.bf16.mxu0 %v577
        %1905 = vmatmul.mubr.bf16.gmra.mrb[0].mxu0 %v576
        %v1906 = vpop.f32.mrb[0].mxu0
        %v1907 = vadd.f32 %v535, %v1906
        %v1908 = vpop.f32.mrb[0].mxu0
        %v1909 = vadd.f32 %v539, %v1908
        %v1910 = vpop.f32.mrb[0].mxu0
        %v1911 = vadd.f32 %v535, %v1910
        %v1912 = vpop.f32.mrb[0].mxu0
        %v1913 = vadd.f32 %v539, %v1912
        %1914 = vdwg.mxu0
        %1915 = vmatprep.subr.bf16.mxu0 %v1425
        %1916 = vmatpush1.bf16.msra.mxu0 %v1424
        %1917 = vmatprep.subr.bf16.mxu0 %v1429
        %1918 = vmatpush1.bf16.msra.mxu0 %v1428
        %1919 = vmatprep.subr.bf16.mxu0 %v1433
        %1920 = vmatpush1.bf16.msra.mxu0 %v1432
        %1921 = vmatprep.subr.bf16.mxu0 %v1437
        %1922 = vmatpush1.bf16.msra.mxu0 %v1436
        %1923 = vmatprep.subr.bf16.mxu0 %v1441
        %1924 = vmatpush1.bf16.msra.mxu0 %v1440
        %1925 = vmatprep.subr.bf16.mxu0 %v1445
        %1926 = vmatpush1.bf16.msra.mxu0 %v1444
        %1927 = vmatprep.subr.bf16.mxu0 %v1449
        %1928 = vmatpush1.bf16.msra.mxu0 %v1448
        %1929 = vmatprep.subr.bf16.mxu0 %v1453
        %1930 = vmatpush1.bf16.msra.mxu0 %v1452
        %1931 = vmatprep.subr.bf16.mxu0 %v1457
        %1932 = vmatpush1.bf16.msra.mxu0 %v1456
        %1933 = vmatprep.subr.bf16.mxu0 %v1461
        %1934 = vmatpush1.bf16.msra.mxu0 %v1460
        %1935 = vmatprep.subr.bf16.mxu0 %v1465
        %1936 = vmatpush1.bf16.msra.mxu0 %v1464
        %1937 = vmatprep.subr.bf16.mxu0 %v1469
        %1938 = vmatpush1.bf16.msra.mxu0 %v1468
        %1939 = vmatprep.subr.bf16.mxu0 %v1473
        %1940 = vmatpush1.bf16.msra.mxu0 %v1472
        %1941 = vmatprep.subr.bf16.mxu0 %v1477
        %1942 = vmatpush1.bf16.msra.mxu0 %v1476
        %1943 = vmatprep.subr.bf16.mxu0 %v1481
        %1944 = vmatpush1.bf16.msra.mxu0 %v1480
        %1945 = vmatprep.subr.bf16.mxu0 %v1485
        %1946 = vmatpush1.bf16.msra.mxu0 %v1484
        %1947 = vmatprep.mubr.bf16.mxu0 %v579
        %1948 = vmatmul.mubr.bf16.gmra.mrb[0].mxu0 %v578
        %v1949 = vpop.f32.mrb[0].mxu0
        %v1950 = vadd.f32 %v1907, %v1949
        %v1951 = vpop.f32.mrb[0].mxu0
        %v1952 = vadd.f32 %v1909, %v1951
        %v1953 = vpop.f32.mrb[0].mxu0
        %v1954 = vadd.f32 %v1911, %v1953
        %v1955 = vpop.f32.mrb[0].mxu0
        %v1956 = vadd.f32 %v1913, %v1955
        %1957 = vdwg.mxu0
        %1958 = vmatprep.subr.bf16.mxu0 %v1489
        %1959 = vmatpush1.bf16.msra.mxu0 %v1488
        %1960 = vmatprep.subr.bf16.mxu0 %v1493
        %1961 = vmatpush1.bf16.msra.mxu0 %v1492
        %1962 = vmatprep.subr.bf16.mxu0 %v1497
        %1963 = vmatpush1.bf16.msra.mxu0 %v1496
        %1964 = vmatprep.subr.bf16.mxu0 %v1501
        %1965 = vmatpush1.bf16.msra.mxu0 %v1500
        %1966 = vmatprep.subr.bf16.mxu0 %v1505
        %1967 = vmatpush1.bf16.msra.mxu0 %v1504
        %1968 = vmatprep.subr.bf16.mxu0 %v1509
        %1969 = vmatpush1.bf16.msra.mxu0 %v1508
        %1970 = vmatprep.subr.bf16.mxu0 %v1513
        %1971 = vmatpush1.bf16.msra.mxu0 %v1512
        %1972 = vmatprep.subr.bf16.mxu0 %v1517
        %1973 = vmatpush1.bf16.msra.mxu0 %v1516
        %1974 = vmatprep.subr.bf16.mxu0 %v1521
        %1975 = vmatpush1.bf16.msra.mxu0 %v1520
        %1976 = vmatprep.subr.bf16.mxu0 %v1525
        %1977 = vmatpush1.bf16.msra.mxu0 %v1524
        %1978 = vmatprep.subr.bf16.mxu0 %v1529
        %1979 = vmatpush1.bf16.msra.mxu0 %v1528
        %1980 = vmatprep.subr.bf16.mxu0 %v1533
        %1981 = vmatpush1.bf16.msra.mxu0 %v1532
        %1982 = vmatprep.subr.bf16.mxu0 %v1537
        %1983 = vmatpush1.bf16.msra.mxu0 %v1536
        %1984 = vmatprep.subr.bf16.mxu0 %v1541
        %1985 = vmatpush1.bf16.msra.mxu0 %v1540
        %1986 = vmatprep.subr.bf16.mxu0 %v1545
        %1987 = vmatpush1.bf16.msra.mxu0 %v1544
        %1988 = vmatprep.subr.bf16.mxu0 %v1549
        %1989 = vmatpush1.bf16.msra.mxu0 %v1548
        %1990 = vmatprep.mubr.bf16.mxu0 %v581
        %1991 = vmatmul.mubr.bf16.gmra.mrb[0].mxu0 %v580
        %v1992 = vpop.f32.mrb[0].mxu0
        %v1993 = vadd.f32 %v1950, %v1992
        %v1994 = vpop.f32.mrb[0].mxu0
        %v1995 = vadd.f32 %v1952, %v1994
        %v1996 = vpop.f32.mrb[0].mxu0
        %v1997 = vadd.f32 %v1954, %v1996
        %v1998 = vpop.f32.mrb[0].mxu0
        %v1999 = vadd.f32 %v1956, %v1998
        %2000 = vdwg.mxu0
        %2001 = vmatprep.subr.bf16.mxu0 %v1553
        %2002 = vmatpush1.bf16.msra.mxu0 %v1552
        %2003 = vmatprep.subr.bf16.mxu0 %v1557
        %2004 = vmatpush1.bf16.msra.mxu0 %v1556
        %2005 = vmatprep.subr.bf16.mxu0 %v1561
        %2006 = vmatpush1.bf16.msra.mxu0 %v1560
        %2007 = vmatprep.subr.bf16.mxu0 %v1565
        %2008 = vmatpush1.bf16.msra.mxu0 %v1564
        %2009 = vmatprep.subr.bf16.mxu0 %v1569
        %2010 = vmatpush1.bf16.msra.mxu0 %v1568
        %2011 = vmatprep.subr.bf16.mxu0 %v1573
        %2012 = vmatpush1.bf16.msra.mxu0 %v1572
        %2013 = vmatprep.subr.bf16.mxu0 %v1577
        %2014 = vmatpush1.bf16.msra.mxu0 %v1576
        %2015 = vmatprep.subr.bf16.mxu0 %v1581
        %2016 = vmatpush1.bf16.msra.mxu0 %v1580
        %2017 = vmatprep.subr.bf16.mxu0 %v1585
        %2018 = vmatpush1.bf16.msra.mxu0 %v1584
        %2019 = vmatprep.subr.bf16.mxu0 %v1589
        %2020 = vmatpush1.bf16.msra.mxu0 %v1588
        %2021 = vmatprep.subr.bf16.mxu0 %v1593
        %2022 = vmatpush1.bf16.msra.mxu0 %v1592
        %2023 = vmatprep.subr.bf16.mxu0 %v1597
        %2024 = vmatpush1.bf16.msra.mxu0 %v1596
        %2025 = vmatprep.subr.bf16.mxu0 %v1601
        %2026 = vmatpush1.bf16.msra.mxu0 %v1600
        %2027 = vmatprep.subr.bf16.mxu0 %v1605
        %2028 = vmatpush1.bf16.msra.mxu0 %v1604
        %2029 = vmatprep.subr.bf16.mxu0 %v1609
        %2030 = vmatpush1.bf16.msra.mxu0 %v1608
        %2031 = vmatprep.subr.bf16.mxu0 %v1613
        %2032 = vmatpush1.bf16.msra.mxu0 %v1612
        %2033 = vmatprep.mubr.bf16.mxu0 %v583
        %2034 = vmatmul.mubr.bf16.gmra.mrb[0].mxu0 %v582
        %v2035 = vpop.f32.mrb[0].mxu0
        %v2036 = vadd.f32 %v1993, %v2035
        %v2037 = vpop.f32.mrb[0].mxu0
        %v2038 = vadd.f32 %v1995, %v2037
        %v2039 = vpop.f32.mrb[0].mxu0
        %v2040 = vadd.f32 %v1997, %v2039
        %v2041 = vpop.f32.mrb[0].mxu0
        %v2042 = vadd.f32 %v1999, %v2041
        %2043 = vdwg.mxu0
        %2044 = vmatprep.subr.bf16.mxu0 %v1363
        %2045 = vmatpush1.bf16.msra.mxu0 %v1362
        %2046 = vmatprep.subr.bf16.mxu0 %v1367
        %2047 = vmatpush1.bf16.msra.mxu0 %v1366
        %2048 = vmatprep.subr.bf16.mxu0 %v1371
        %2049 = vmatpush1.bf16.msra.mxu0 %v1370
        %2050 = vmatprep.subr.bf16.mxu0 %v1375
        %2051 = vmatpush1.bf16.msra.mxu0 %v1374
        %2052 = vmatprep.subr.bf16.mxu0 %v1379
        %2053 = vmatpush1.bf16.msra.mxu0 %v1378
        %2054 = vmatprep.subr.bf16.mxu0 %v1383
        %2055 = vmatpush1.bf16.msra.mxu0 %v1382
        %2056 = vmatprep.subr.bf16.mxu0 %v1387
        %2057 = vmatpush1.bf16.msra.mxu0 %v1386
        %2058 = vmatprep.subr.bf16.mxu0 %v1391
        %2059 = vmatpush1.bf16.msra.mxu0 %v1390
        %2060 = vmatprep.subr.bf16.mxu0 %v1395
        %2061 = vmatpush1.bf16.msra.mxu0 %v1394
        %2062 = vmatprep.subr.bf16.mxu0 %v1399
        %2063 = vmatpush1.bf16.msra.mxu0 %v1398
        %2064 = vmatprep.subr.bf16.mxu0 %v1403
        %2065 = vmatpush1.bf16.msra.mxu0 %v1402
        %2066 = vmatprep.subr.bf16.mxu0 %v1407
        %2067 = vmatpush1.bf16.msra.mxu0 %v1406
        %2068 = vmatprep.subr.bf16.mxu0 %v1411
        %2069 = vmatpush1.bf16.msra.mxu0 %v1410
        %2070 = vmatprep.subr.bf16.mxu0 %v1415
        %2071 = vmatpush1.bf16.msra.mxu0 %v1414
        %2072 = vmatprep.subr.bf16.mxu0 %v1419
        %2073 = vmatpush1.bf16.msra.mxu0 %v1418
        %2074 = vmatprep.subr.bf16.mxu0 %v1423
        %2075 = vmatpush1.bf16.msra.mxu0 %v1422
        %2076 = vmatprep.mubr.bf16.mxu0 %v577
        %2077 = vmatmul.mubr.bf16.gmra.mrb[0].mxu0 %v576
        %v2078 = vpop.f32.mrb[0].mxu0
        %v2079 = vadd.f32 %v543, %v2078
        %v2080 = vpop.f32.mrb[0].mxu0
        %v2081 = vadd.f32 %v547, %v2080
        %v2082 = vpop.f32.mrb[0].mxu0
        %v2083 = vadd.f32 %v543, %v2082
        %v2084 = vpop.f32.mrb[0].mxu0
        %v2085 = vadd.f32 %v547, %v2084
        %2086 = vdwg.mxu0
        %2087 = vmatprep.subr.bf16.mxu0 %v1427
        %2088 = vmatpush1.bf16.msra.mxu0 %v1426
        %2089 = vmatprep.subr.bf16.mxu0 %v1431
        %2090 = vmatpush1.bf16.msra.mxu0 %v1430
        %2091 = vmatprep.subr.bf16.mxu0 %v1435
        %2092 = vmatpush1.bf16.msra.mxu0 %v1434
        %2093 = vmatprep.subr.bf16.mxu0 %v1439
        %2094 = vmatpush1.bf16.msra.mxu0 %v1438
        %2095 = vmatprep.subr.bf16.mxu0 %v1443
        %2096 = vmatpush1.bf16.msra.mxu0 %v1442
        %2097 = vmatprep.subr.bf16.mxu0 %v1447
        %2098 = vmatpush1.bf16.msra.mxu0 %v1446
        %2099 = vmatprep.subr.bf16.mxu0 %v1451
        %2100 = vmatpush1.bf16.msra.mxu0 %v1450
        %2101 = vmatprep.subr.bf16.mxu0 %v1455
        %2102 = vmatpush1.bf16.msra.mxu0 %v1454
        %2103 = vmatprep.subr.bf16.mxu0 %v1459
        %2104 = vmatpush1.bf16.msra.mxu0 %v1458
        %2105 = vmatprep.subr.bf16.mxu0 %v1463
        %2106 = vmatpush1.bf16.msra.mxu0 %v1462
        %2107 = vmatprep.subr.bf16.mxu0 %v1467
        %2108 = vmatpush1.bf16.msra.mxu0 %v1466
        %2109 = vmatprep.subr.bf16.mxu0 %v1471
        %2110 = vmatpush1.bf16.msra.mxu0 %v1470
        %2111 = vmatprep.subr.bf16.mxu0 %v1475
        %2112 = vmatpush1.bf16.msra.mxu0 %v1474
        %2113 = vmatprep.subr.bf16.mxu0 %v1479
        %2114 = vmatpush1.bf16.msra.mxu0 %v1478
        %2115 = vmatprep.subr.bf16.mxu0 %v1483
        %2116 = vmatpush1.bf16.msra.mxu0 %v1482
        %2117 = vmatprep.subr.bf16.mxu0 %v1487
        %2118 = vmatpush1.bf16.msra.mxu0 %v1486
        %2119 = vmatprep.mubr.bf16.mxu0 %v579
        %2120 = vmatmul.mubr.bf16.gmra.mrb[0].mxu0 %v578
        %v2121 = vpop.f32.mrb[0].mxu0
        %v2122 = vadd.f32 %v2079, %v2121
        %v2123 = vpop.f32.mrb[0].mxu0
        %v2124 = vadd.f32 %v2081, %v2123
        %v2125 = vpop.f32.mrb[0].mxu0
        %v2126 = vadd.f32 %v2083, %v2125
        %v2127 = vpop.f32.mrb[0].mxu0
        %v2128 = vadd.f32 %v2085, %v2127
        %2129 = vdwg.mxu0
        %2130 = vmatprep.subr.bf16.mxu0 %v1491
        %2131 = vmatpush1.bf16.msra.mxu0 %v1490
        %2132 = vmatprep.subr.bf16.mxu0 %v1495
        %2133 = vmatpush1.bf16.msra.mxu0 %v1494
        %2134 = vmatprep.subr.bf16.mxu0 %v1499
        %2135 = vmatpush1.bf16.msra.mxu0 %v1498
        %2136 = vmatprep.subr.bf16.mxu0 %v1503
        %2137 = vmatpush1.bf16.msra.mxu0 %v1502
        %2138 = vmatprep.subr.bf16.mxu0 %v1507
        %2139 = vmatpush1.bf16.msra.mxu0 %v1506
        %2140 = vmatprep.subr.bf16.mxu0 %v1511
        %2141 = vmatpush1.bf16.msra.mxu0 %v1510
        %2142 = vmatprep.subr.bf16.mxu0 %v1515
        %2143 = vmatpush1.bf16.msra.mxu0 %v1514
        %2144 = vmatprep.subr.bf16.mxu0 %v1519
        %2145 = vmatpush1.bf16.msra.mxu0 %v1518
        %2146 = vmatprep.subr.bf16.mxu0 %v1523
        %2147 = vmatpush1.bf16.msra.mxu0 %v1522
        %2148 = vmatprep.subr.bf16.mxu0 %v1527
        %2149 = vmatpush1.bf16.msra.mxu0 %v1526
        %2150 = vmatprep.subr.bf16.mxu0 %v1531
        %2151 = vmatpush1.bf16.msra.mxu0 %v1530
        %2152 = vmatprep.subr.bf16.mxu0 %v1535
        %2153 = vmatpush1.bf16.msra.mxu0 %v1534
        %2154 = vmatprep.subr.bf16.mxu0 %v1539
        %2155 = vmatpush1.bf16.msra.mxu0 %v1538
        %2156 = vmatprep.subr.bf16.mxu0 %v1543
        %2157 = vmatpush1.bf16.msra.mxu0 %v1542
        %2158 = vmatprep.subr.bf16.mxu0 %v1547
        %2159 = vmatpush1.bf16.msra.mxu0 %v1546
        %2160 = vmatprep.subr.bf16.mxu0 %v1551
        %2161 = vmatpush1.bf16.msra.mxu0 %v1550
        %2162 = vmatprep.mubr.bf16.mxu0 %v581
        %2163 = vmatmul.mubr.bf16.gmra.mrb[0].mxu0 %v580
        %v2164 = vpop.f32.mrb[0].mxu0
        %v2165 = vadd.f32 %v2122, %v2164
        %v2166 = vpop.f32.mrb[0].mxu0
        %v2167 = vadd.f32 %v2124, %v2166
        %v2168 = vpop.f32.mrb[0].mxu0
        %v2169 = vadd.f32 %v2126, %v2168
        %v2170 = vpop.f32.mrb[0].mxu0
        %v2171 = vadd.f32 %v2128, %v2170
        %2172 = vdwg.mxu0
        %2173 = vmatprep.subr.bf16.mxu0 %v1555
        %2174 = vmatpush1.bf16.msra.mxu0 %v1554
        %2175 = vmatprep.subr.bf16.mxu0 %v1559
        %2176 = vmatpush1.bf16.msra.mxu0 %v1558
        %2177 = vmatprep.subr.bf16.mxu0 %v1563
        %2178 = vmatpush1.bf16.msra.mxu0 %v1562
        %2179 = vmatprep.subr.bf16.mxu0 %v1567
        %2180 = vmatpush1.bf16.msra.mxu0 %v1566
        %2181 = vmatprep.subr.bf16.mxu0 %v1571
        %2182 = vmatpush1.bf16.msra.mxu0 %v1570
        %2183 = vmatprep.subr.bf16.mxu0 %v1575
        %2184 = vmatpush1.bf16.msra.mxu0 %v1574
        %2185 = vmatprep.subr.bf16.mxu0 %v1579
        %2186 = vmatpush1.bf16.msra.mxu0 %v1578
        %2187 = vmatprep.subr.bf16.mxu0 %v1583
        %2188 = vmatpush1.bf16.msra.mxu0 %v1582
        %2189 = vmatprep.subr.bf16.mxu0 %v1587
        %2190 = vmatpush1.bf16.msra.mxu0 %v1586
        %2191 = vmatprep.subr.bf16.mxu0 %v1591
        %2192 = vmatpush1.bf16.msra.mxu0 %v1590
        %2193 = vmatprep.subr.bf16.mxu0 %v1595
        %2194 = vmatpush1.bf16.msra.mxu0 %v1594
        %2195 = vmatprep.subr.bf16.mxu0 %v1599
        %2196 = vmatpush1.bf16.msra.mxu0 %v1598
        %2197 = vmatprep.subr.bf16.mxu0 %v1603
        %2198 = vmatpush1.bf16.msra.mxu0 %v1602
        %2199 = vmatprep.subr.bf16.mxu0 %v1607
        %2200 = vmatpush1.bf16.msra.mxu0 %v1606
        %2201 = vmatprep.subr.bf16.mxu0 %v1611
        %2202 = vmatpush1.bf16.msra.mxu0 %v1610
        %2203 = vmatprep.subr.bf16.mxu0 %v1615
        %2204 = vmatpush1.bf16.msra.mxu0 %v1614
        %2205 = vmatprep.mubr.bf16.mxu0 %v583
        %2206 = vmatmul.mubr.bf16.gmra.mrb[0].mxu0 %v582
        %v2207 = vpop.f32.mrb[0].mxu0
        %v2208 = vadd.f32 %v2165, %v2207
        %v2209 = vpop.f32.mrb[0].mxu0
        %v2210 = vadd.f32 %v2167, %v2209
        %v2211 = vpop.f32.mrb[0].mxu0
        %v2212 = vadd.f32 %v2169, %v2211
        %v2213 = vpop.f32.mrb[0].mxu0
        %v2214 = vadd.f32 %v2171, %v2213
        %2215 = vdwg.mxu0
        %2216 = vst [vmem:[%s254] sm:$0xff] %v2036
        %2217 = vst [vmem:[%s254 + $0x8] sm:$0xff] %v2038
        %2218 = vst [vmem:[%s254 + $0x10] sm:$0xff] %v2208
        %2219 = vst [vmem:[%s254 + $0x18] sm:$0xff] %v2210
        %2220 = vst [vmem:[%s254 + $0x20] sm:$0xff] %v2040
        %2221 = vst [vmem:[%s254 + $0x28] sm:$0xff] %v2042
        %2222 = vst [vmem:[%s254 + $0x30] sm:$0xff] %v2212
        %2223 = vst [vmem:[%s254 + $0x38] sm:$0xff] %v2214
        %s2224 = sand.u32 %s120, 1
        %s2225 = sand.u32 %s120, 1
        %s2226 = smul.addr %s2225, 64
        %s2227 = scalar_lea.vmem [#allocation6], %s2226
        // Predicated region
        $region41: #{linear_classifier_forward.1} parent=31 // pred_check
          %p2228 = pneg %p130
        $region42: #{linear_classifier_forward.1} parent=31 // pred_check_branch
          %2230 = sbr.rel (%p2228) target = $region44
        $region43: #{linear_classifier_forward.1} parent=31 // pred_region
          %s2231 = smul.u32 2, %s24
          %s2232 = smul.u32 4, %s25
          %s2233 = smul.addr %s2231, 8
          %s2234 = sadd.s32 %s2232, %s2233
          %s2235 = smul.addr %s2234, 8
          %s2236 = scalar_lea.vmem %s3, %s2235
          // Predicated region
          $region45: #{linear_classifier_forward.1} parent=43 // pred_check
            _
          $region46: #{linear_classifier_forward.1} parent=43 // pred_check_branch
            %2238 = sbr.rel (0) target = $region48
          $region47: #{linear_classifier_forward.1} parent=43 // pred_region
            // Predicated region
            $region49: #{linear_classifier_forward.1} parent=47 // pred_check
              _
            $region50: #{linear_classifier_forward.1} parent=47 // pred_check_branch
              %2240 = sbr.rel (0) target = $region52
            $region51: #{linear_classifier_forward.1} parent=47 // pred_region
              loop: start=0, step=1, limit=1
              $region53: #{linear_classifier_forward.1} parent=51 // loop_pre_header
                _
              $region54: #{linear_classifier_forward.1} parent=51 // loop_header
                %s2242 = sphi 0, %s2246
                %p2243 = scmp.ge.s32.totalorder %s2242, 1
                %s2247 = sphi %s2227, %s2227
                %s2248 = sphi %s2236, %s2236
              $region55: #{linear_classifier_forward.1} parent=51 // loop_header_branch
                %2245 = sbr.rel (%p2243) target = $region59
              $region56: #{linear_classifier_forward.1} parent=51 // loop_body
                %v2249 = vld [vmem:[%s2247] sm:$0xff]
                %2250 = vst [vmem:[%s2248] sm:$0xff] %v2249
                %v2251 = vld [vmem:[%s2247 + $0x8] sm:$0xff]
                %2252 = vst [vmem:[%s2248 + $0x8] sm:$0xff] %v2251
                %v2253 = vld [vmem:[%s2247 + $0x10] sm:$0xff]
                %2254 = vst [vmem:[%s2248 + $0x10] sm:$0xff] %v2253
                %v2255 = vld [vmem:[%s2247 + $0x18] sm:$0xff]
                %2256 = vst [vmem:[%s2248 + $0x18] sm:$0xff] %v2255
                %v2257 = vld [vmem:[%s2247 + $0x20] sm:$0xff]
                %2258 = vst [vmem:[%s2248 + $0x40] sm:$0xff] %v2257
                %v2259 = vld [vmem:[%s2247 + $0x28] sm:$0xff]
                %2260 = vst [vmem:[%s2248 + $0x48] sm:$0xff] %v2259
                %v2261 = vld [vmem:[%s2247 + $0x30] sm:$0xff]
                %2262 = vst [vmem:[%s2248 + $0x50] sm:$0xff] %v2261
                %v2263 = vld [vmem:[%s2247 + $0x38] sm:$0xff]
                %2264 = vst [vmem:[%s2248 + $0x58] sm:$0xff] %v2263
              $region57: #{linear_classifier_forward.1} parent=51 // loop_footer
                %s2246 = sadd.s32 1, %s2242
              $region58: #{linear_classifier_forward.1} parent=51 // loop_footer_branch
                %2241 = sbr.rel target = $region54
              $region59: #{linear_classifier_forward.1} parent=51 // loop_exit
                _
            $region52: #{linear_classifier_forward.1} parent=47 // pred_fallthru
              _
            // Predicated region
            $region60: #{linear_classifier_forward.1} parent=47 // pred_check
              _
            $region61: #{linear_classifier_forward.1} parent=47 // pred_check_branch
              %2266 = sbr.rel target = $region63
            $region62: #{linear_classifier_forward.1} parent=47 // pred_region
              _
            $region63: #{linear_classifier_forward.1} parent=47 // pred_fallthru
              _
          $region48: #{linear_classifier_forward.1} parent=43 // pred_fallthru
            _
          %2267 = vnop
        $region44: #{linear_classifier_forward.1} parent=31 // pred_fallthru
          _
      $region32: #{linear_classifier_forward.1} parent=5 // pred_fallthru
        _
      %p2268 = scmp.le.s32.totalorder 2, %s15
      // Predicated region
      $region64: #{linear_classifier_forward.1} parent=5 // pred_check
        %p2269 = pneg %p2268
      $region65: #{linear_classifier_forward.1} parent=5 // pred_check_branch
        %2271 = sbr.rel (%p2269) target = $region67
      $region66: #{linear_classifier_forward.1} parent=5 // pred_region
        %s2272 = ssub.s32 %s15, 2
        // Predicated region
        $region68: #{linear_classifier_forward.1} parent=66 // pred_check
          %p2273 = pneg %p136
        $region69: #{linear_classifier_forward.1} parent=66 // pred_check_branch
          %2275 = sbr.rel (%p2273) target = $region71
        $region70: #{linear_classifier_forward.1} parent=66 // pred_region
          %s2276 = sand.u32 %s121, 1
          %s2277 = sand.u32 %s121, 1
          %s2278 = smul.addr %s2277, 64
          %s2279 = scalar_lea.vmem [#allocation6], %s2278
        $region71: #{linear_classifier_forward.1} parent=66 // pred_fallthru
          _
      $region67: #{linear_classifier_forward.1} parent=5 // pred_fallthru
        _
    $region6: #{linear_classifier_forward.1} parent=1 // loop_footer
      %s19 = sadd.s32 1, %s15
    $region7: #{linear_classifier_forward.1} parent=1 // loop_footer_branch
      %14 = sbr.rel target = $region3
    $region8: #{linear_classifier_forward.1} parent=1 // loop_exit
      _
    %2280 = vsyncpa [#allocation3], 1
    %s2281 = scalar_lea.sflag [#allocation3], 1
    %2282 = vsyncpa %s2281, 1
    %2283 = vsyncpa [#allocation5], 1
    %s2284 = scalar_lea.sflag [#allocation5], 1
    %2285 = vsyncpa %s2284, 1

</llo_original>
